<compile_context>
chip_gen: v6e
topology: v6e:2x2x1
jax: 0.10.0
libtpu: 0.0.40
codegen_flags: <defaults>
</compile_context>

<pallas_src>
import jax
import jax.numpy as jnp
from jax.experimental import pallas as pl
from jax.experimental.pallas import tpu as pltpu

EPS = 1e-5
COMPUTE_DTYPE = jnp.bfloat16      # MXU operand dtype + inter-pass intermediates


# --------------------------------------------------------------------------
# Helpers
# --------------------------------------------------------------------------
def _pick_row_tile(H):
    """Row-tile height for the conv passes (divides H, >=2 tiles if possible)."""
    for th in (128, 64, 32, 16, 8):
        if H % th == 0 and H // th >= 2:
            return th
    return H


def _pick_row_block(rows):
    """Row-block for the element-wise pass (large, divides rows, 8-aligned)."""
    for tr in (512, 256, 128, 64, 32, 16, 8):
        if rows % tr == 0:
            return tr
    return rows


def _vmem_limit_bytes():
    """~75% of physical VMEM: ~48 MiB on v7x (64 MiB), ~96 MiB on v5e/v6e."""
    cap = 128 * 1024 * 1024
    try:
        info = pltpu.get_tpu_info()
        cap = int(getattr(info, "vmem_capacity_bytes", cap) or cap)
    except Exception:
        pass
    return int(min(cap * 3 // 4, 112 * 1024 * 1024))


def _conv3x3_acc(read_tap, w_ref, TH, W, C):
    """3x3 conv as 9 accumulated K=C matmuls (f32 accumulation, no patches
    matrix).  `read_tap(dy, dx)` returns the (TH, W, C) bf16 tap."""
    acc = jnp.zeros((TH * W, C), jnp.float32)
    for dy in range(3):
        for dx in range(3):
            tap = read_tap(dy, dx).reshape(TH * W, C)
            acc = acc + jnp.dot(tap, w_ref[dy * 3 + dx],
                                preferred_element_type=jnp.float32)
    return acc                                              # (TH*W, C) f32


def _store_stats(stats_ref, acc):
    """Per-tile [sum, sum_of_squares] from the f32 accumulator."""
    stats_ref[0:1, :] = jnp.sum(acc, axis=0, keepdims=True)
    stats_ref[1:2, :] = jnp.sum(acc * acc, axis=0, keepdims=True)


# --------------------------------------------------------------------------
# Kernels
# --------------------------------------------------------------------------
def _conv1_stats_kernel(xpad_ref, w_ref, y_ref, stats_ref):
    # xpad_ref:  (H+2, W+2, C) bf16  wrapper-padded image (resident across tiles)
    # w_ref:     (9, C, C)     bf16  conv1 weight, one (Cin,Cout) slab per tap
    # y_ref:     (TH, W, C)    bf16  raw conv1 output tile
    # stats_ref: (2, C)        f32   per-tile [sum, sumsq]
    t = pl.program_id(1)
    TH, W, C = y_ref.shape
    row0 = t * TH

    def read_tap(dy, dx):
        return xpad_ref[pl.ds(row0 + dy, TH), dx:dx + W, :]

    acc = _conv3x3_acc(read_tap, w_ref, TH, W, C)
    _store_stats(stats_ref, acc)
    y_ref[...] = acc.reshape(TH, W, C).astype(y_ref.dtype)


def _bn1_prelu_conv2_kernel(y1_ref, scale_ref, shift_ref, alpha_ref, w_ref,
                            y2_ref, stats_ref, apad_ref):
    # y1_ref:    (H, W, C)       bf16  full raw conv1 output (resident)
    # scale_ref: (1, C) f32  folded BN1 scale;  shift_ref: (1, C) f32  shift
    # alpha_ref: (1, 1) f32  shared PReLU slope
    # w_ref:     (9, C, C)       bf16  conv2 weight slabs
    # y2_ref:    (TH, W, C)      bf16  raw conv2 output tile
    # stats_ref: (2, C)          f32   per-tile [sum, sumsq]
    # apad_ref:  (TH+2, W+2, C)  bf16  padded-activation scratch
    t = pl.program_id(1)
    nt = pl.num_programs(1)
    H, W, C = y1_ref.shape
    TH = y2_ref.shape[0]
    row0 = t * TH

    scale = scale_ref[...]
    shift = shift_ref[...]
    alpha = alpha_ref[...]

    def bn_prelu(v):                                   # bf16 -> f32
        a = v.astype(jnp.float32) * scale + shift
        return jnp.where(a > 0.0, a, alpha * a)

    # Zero the left/right column halo (full scratch height) every step.
    zcol = jnp.zeros((TH + 2, 1, C), apad_ref.dtype)
    apad_ref[:, 0:1, :] = zcol
    apad_ref[:, W + 1:W + 2, :] = zcol

    # Interior rows of this tile.
    apad_ref[1:TH + 1, 1:W + 1, :] = bn_prelu(
        y1_ref[pl.ds(row0, TH), :, :]).astype(apad_ref.dtype)

    # Halo rows: neighbouring tile rows, zeroed at the true image boundary.
    top_keep = (t > 0).astype(jnp.float32)
    top = bn_prelu(y1_ref[pl.ds(jnp.maximum(row0 - 1, 0), 1), :, :])
    apad_ref[0:1, 1:W + 1, :] = (top * top_keep).astype(apad_ref.dtype)

    bot_keep = (t < nt - 1).astype(jnp.float32)
    bot = bn_prelu(y1_ref[pl.ds(jnp.minimum(row0 + TH, H - 1), 1), :, :])
    apad_ref[TH + 1:TH + 2, 1:W + 1, :] = (bot * bot_keep).astype(apad_ref.dtype)

    def read_tap(dy, dx):
        return apad_ref[dy:dy + TH, dx:dx + W, :]

    acc = _conv3x3_acc(read_tap, w_ref, TH, W, C)
    _store_stats(stats_ref, acc)
    y2_ref[...] = acc.reshape(TH, W, C).astype(y2_ref.dtype)


def _bn2_residual_kernel(x_ref, y2_ref, scale_ref, shift_ref, out_ref):
    # Lane-dense element-wise pass: out = x + y2*scale + shift  (out aliases x)
    out_ref[...] = (x_ref[...]
                    + y2_ref[...].astype(jnp.float32) * scale_ref[...]
                    + shift_ref[...])


# --------------------------------------------------------------------------
# Wrapper
# --------------------------------------------------------------------------
def _fold_bn(stats, gamma, beta, count):
    """Fold training-mode BatchNorm into per-channel scale/shift.

    Note: E[x^2] - E[x]^2 in f32 with a clamp; adequate here (inputs are
    normalized-scale activations)."""
    total = jnp.sum(stats[:, :, 0, :], axis=(0, 1))
    total_sq = jnp.sum(stats[:, :, 1, :], axis=(0, 1))
    mean = total / count
    var = jnp.maximum(total_sq / count - mean * mean, 0.0)
    scale = gamma * jax.lax.rsqrt(var + EPS)
    shift = beta - mean * scale
    return scale, shift


def residual_block(x_nchw, params):
    """SRGAN ResidualBlock forward. x_nchw: (N, C, H, W) f32 -> (N, C, H, W)."""
    N, C, H, W = x_nchw.shape
    x = jnp.transpose(x_nchw, (0, 2, 3, 1)).astype(jnp.float32)        # NHWC

    # Wrapper-side zero padding (bf16) for conv1.
    x_pad = jnp.pad(x.astype(COMPUTE_DTYPE), ((0, 0), (1, 1), (1, 1), (0, 0)))

    # PyTorch conv weight (Cout, Cin, 3, 3) -> (ky, kx, Cin, Cout) -> (9, C, C).
    # Conv biases dropped: cancelled exactly by training-mode BN mean subtraction.
    w1s = jnp.transpose(params["w1"], (2, 3, 1, 0)).reshape(9, C, C).astype(COMPUTE_DTYPE)
    w2s = jnp.transpose(params["w2"], (2, 3, 1, 0)).reshape(9, C, C).astype(COMPUTE_DTYPE)
    alpha = params["alpha"].reshape(1, 1).astype(jnp.float32)

    TH = _pick_row_tile(H)
    T = H // TH
    vmem_limit = _vmem_limit_bytes()

    cparams2d = pltpu.CompilerParams(
        dimension_semantics=("parallel", "parallel"),
        vmem_limit_bytes=vmem_limit)
    cparams1d = pltpu.CompilerParams(
        dimension_semantics=("parallel",),
        vmem_limit_bytes=vmem_limit)

    xpad_spec = pl.BlockSpec((None, H + 2, W + 2, C), lambda n, t: (n, 0, 0, 0))
    img_full_spec = pl.BlockSpec((None, H, W, C), lambda n, t: (n, 0, 0, 0))
    tile_spec = pl.BlockSpec((None, TH, W, C), lambda n, t: (n, t, 0, 0))
    stat_spec = pl.BlockSpec((None, None, 2, C), lambda n, t: (n, t, 0, 0))
    wgt_spec = pl.BlockSpec((9, C, C), lambda n, t: (0, 0, 0))
    chan_spec = pl.BlockSpec((1, C), lambda n, t: (0, 0))
    alpha_spec = pl.BlockSpec((1, 1), lambda n, t: (0, 0))

    count = float(N * H * W)

    # ---- pass 1: conv1 + per-tile BN1 partial stats (bf16 output) ----------
    y1_raw, stats1 = pl.pallas_call(
        _conv1_stats_kernel,
        grid_spec=pltpu.PrefetchScalarGridSpec(
            num_scalar_prefetch=0, grid=(N, T),
            in_specs=[xpad_spec, wgt_spec],
            out_specs=[tile_spec, stat_spec]),
        out_shape=(jax.ShapeDtypeStruct((N, H, W, C), COMPUTE_DTYPE),
                   jax.ShapeDtypeStruct((N, T, 2, C), jnp.float32)),
        compiler_params=cparams2d,
    )(x_pad, w1s)

    scale1, shift1 = _fold_bn(stats1, params["g1"], params["be1"], count)

    # ---- pass 2: folded BN1 + PReLU + conv2 + BN2 partial stats ------------
    y2_raw, stats2 = pl.pallas_call(
        _bn1_prelu_conv2_kernel,
        grid_spec=pltpu.PrefetchScalarGridSpec(
            num_scalar_prefetch=0, grid=(N, T),
            in_specs=[img_full_spec, chan_spec, chan_spec, alpha_spec, wgt_spec],
            out_specs=[tile_spec, stat_spec],
            scratch_shapes=[pltpu.VMEM((TH + 2, W + 2, C), COMPUTE_DTYPE)]),
        out_shape=(jax.ShapeDtypeStruct((N, H, W, C), COMPUTE_DTYPE),
                   jax.ShapeDtypeStruct((N, T, 2, C), jnp.float32)),
        compiler_params=cparams2d,
    )(y1_raw, scale1.reshape(1, C), shift1.reshape(1, C), alpha, w2s)

    scale2, shift2 = _fold_bn(stats2, params["g2"], params["be2"], count)

    # ---- pass 3: folded BN2 + residual add (lane-dense, output aliases x) --
    WC = W * C
    rows = N * H
    TR = _pick_row_block(rows)
    x2d = x.reshape(rows, WC)
    y2d = y2_raw.reshape(rows, WC)
    scale2_l = jnp.tile(scale2.reshape(1, C), (1, W))     # channel pattern per w
    shift2_l = jnp.tile(shift2.reshape(1, C), (1, W))

    row_spec = pl.BlockSpec((TR, WC), lambda r: (r, 0))
    lane_spec = pl.BlockSpec((1, WC), lambda r: (0, 0))

    out2d = pl.pallas_call(
        _bn2_residual_kernel,
        grid_spec=pltpu.PrefetchScalarGridSpec(
            num_scalar_prefetch=0, grid=(rows // TR,),
            in_specs=[row_spec, row_spec, lane_spec, lane_spec],
            out_specs=row_spec),
        out_shape=jax.ShapeDtypeStruct((rows, WC), jnp.float32),
        compiler_params=cparams1d,
        input_output_aliases={0: 0},
    )(x2d, y2d, scale2_l, shift2_l)

    out = out2d.reshape(N, H, W, C)
    return jnp.transpose(out, (0, 3, 1, 2))


# --------------------------------------------------------------------------
# Pure-JAX reference (PyTorch semantics: conv with bias, training-mode BN)
# --------------------------------------------------------------------------
def residual_block_ref(x_nchw, params):
    x = jnp.transpose(x_nchw, (0, 2, 3, 1)).astype(jnp.float32)
    dn = ("NHWC", "HWIO", "NHWC")

    def bn(y, g, b):
        m = jnp.mean(y, axis=(0, 1, 2))
        v = jnp.mean((y - m) ** 2, axis=(0, 1, 2))
        return (y - m) / jnp.sqrt(v + EPS) * g + b

    w1 = jnp.transpose(params["w1"], (2, 3, 1, 0))
    w2 = jnp.transpose(params["w2"], (2, 3, 1, 0))
    y = jax.lax.conv_general_dilated(x, w1, (1, 1), "SAME",
                                     dimension_numbers=dn) + params["b1"]
    y = bn(y, params["g1"], params["be1"])
    y = jnp.where(y > 0.0, y, params["alpha"] * y)
    y = jax.lax.conv_general_dilated(y, w2, (1, 1), "SAME",
                                     dimension_numbers=dn) + params["b2"]
    y = bn(y, params["g2"], params["be2"])
    return jnp.transpose(x + y, (0, 3, 1, 2))


def make_params(key, channels):
    ks = jax.random.split(key, 8)
    scale = 0.1
    return {
        "w1": scale * jax.random.normal(ks[0], (channels, channels, 3, 3), jnp.float32),
        "b1": scale * jax.random.normal(ks[1], (channels,), jnp.float32),
        "g1": 1.0 + scale * jax.random.normal(ks[2], (channels,), jnp.float32),
        "be1": scale * jax.random.normal(ks[3], (channels,), jnp.float32),
        "alpha": jnp.array(0.25, jnp.float32),            # PReLU default init
        "w2": scale * jax.random.normal(ks[4], (channels, channels, 3, 3), jnp.float32),
        "b2": scale * jax.random.normal(ks[5], (channels,), jnp.float32),
        "g2": 1.0 + scale * jax.random.normal(ks[6], (channels,), jnp.float32),
        "be2": scale * jax.random.normal(ks[7], (channels,), jnp.float32),
    }


if __name__ == "__main__":
    key = jax.random.PRNGKey(0)
    k_x, k_p = jax.random.split(key)

    N, C, H, W = 2, 4, 16, 16
    x = jax.random.normal(k_x, (N, C, H, W), jnp.float32)
    params = make_params(k_p, C)

    out = jax.block_until_ready(residual_block(x, params))
    ref = residual_block_ref(x, params)

    assert out.shape == (N, C, H, W)
    # Tolerance accounts for bf16 MXU operands + bf16 inter-pass intermediates.
    assert jnp.allclose(out, ref, atol=5e-2, rtol=5e-2), "mismatch vs reference"

    print("KERNEL_OK")
</pallas_src>

<mosaic_0001>
module attributes {stable_mosaic.version = 11 : i64} {
  func.func @_conv1_stats_kernel(%arg0: i32, %arg1: i32, %arg2: memref<1x18x18x4xbf16, #tpu.memory_space<vmem>>, %arg3: memref<9x4x4xbf16, #tpu.memory_space<vmem>>, %arg4: memref<1x8x16x4xbf16, #tpu.memory_space<vmem>>, %arg5: memref<1x1x2x4xf32, #tpu.memory_space<vmem>>) attributes {dimension_semantics = [#tpu.dimension_semantics<parallel>, #tpu.dimension_semantics<parallel>], iteration_bounds = array<i64: 2, 2>, scalar_prefetch = 0 : i64, scratch_operands = 0 : i64, tpu.core_type = #tpu.core_type<tc>, window_params = [{transform_indices = @transform_0, window_bounds = array<i64: 1, 18, 18, 4>}, {pipeline_mode = #tpu.pipeline_mode<synchronous>, transform_indices = @transform_1, window_bounds = array<i64: 9, 4, 4>}, {transform_indices = @transform_2, window_bounds = array<i64: 1, 8, 16, 4>}, {transform_indices = @transform_3, window_bounds = array<i64: 1, 1, 2, 4>}]} {
    %c8_i32 = arith.constant 8 : i32
    %0 = arith.muli %arg1, %c8_i32 : i32
    %cst = arith.constant 0.000000e+00 : f32
    %1 = vector.broadcast %cst : f32 to vector<128x4xf32>
    %c0_i32 = arith.constant 0 : i32
    %2 = arith.addi %0, %c0_i32 : i32
    %c0 = arith.constant 0 : index
    %3 = arith.index_cast %2 : i32 to index
    %c0_0 = arith.constant 0 : index
    %c0_1 = arith.constant 0 : index
    %4 = vector.load %arg2[%c0, %3, %c0_0, %c0_1] : memref<1x18x18x4xbf16, #tpu.memory_space<vmem>>, vector<1x8x16x4xbf16>
    %5 = vector.shape_cast %4 : vector<1x8x16x4xbf16> to vector<8x16x4xbf16>
    %6 = vector.shape_cast %5 : vector<8x16x4xbf16> to vector<128x4xbf16>
    %c0_2 = arith.constant 0 : index
    %c0_3 = arith.constant 0 : index
    %c0_4 = arith.constant 0 : index
    %7 = vector.load %arg3[%c0_2, %c0_3, %c0_4] : memref<9x4x4xbf16, #tpu.memory_space<vmem>>, vector<1x4x4xbf16>
    %8 = vector.shape_cast %7 : vector<1x4x4xbf16> to vector<4x4xbf16>
    %cst_5 = arith.constant dense<0.000000e+00> : vector<128x4xf32>
    %9 = tpu.matmul %6, %8, %cst_5 {dimension_numbers = #tpu.dot_dimension_numbers<[1], [0], [0], [1], [0, 0, 1, 1], [], []>} : vector<128x4xbf16>, vector<4x4xbf16>, vector<128x4xf32> -> vector<128x4xf32>
    %10 = arith.addf %1, %9 : vector<128x4xf32>
    %c0_i32_6 = arith.constant 0 : i32
    %11 = arith.addi %0, %c0_i32_6 : i32
    %c0_7 = arith.constant 0 : index
    %12 = arith.index_cast %11 : i32 to index
    %c1 = arith.constant 1 : index
    %c0_8 = arith.constant 0 : index
    %13 = vector.load %arg2[%c0_7, %12, %c1, %c0_8] : memref<1x18x18x4xbf16, #tpu.memory_space<vmem>>, vector<1x8x16x4xbf16>
    %14 = vector.shape_cast %13 : vector<1x8x16x4xbf16> to vector<8x16x4xbf16>
    %15 = vector.shape_cast %14 : vector<8x16x4xbf16> to vector<128x4xbf16>
    %c1_9 = arith.constant 1 : index
    %c0_10 = arith.constant 0 : index
    %c0_11 = arith.constant 0 : index
    %16 = vector.load %arg3[%c1_9, %c0_10, %c0_11] : memref<9x4x4xbf16, #tpu.memory_space<vmem>>, vector<1x4x4xbf16>
    %17 = vector.shape_cast %16 : vector<1x4x4xbf16> to vector<4x4xbf16>
    %cst_12 = arith.constant dense<0.000000e+00> : vector<128x4xf32>
    %18 = tpu.matmul %15, %17, %cst_12 {dimension_numbers = #tpu.dot_dimension_numbers<[1], [0], [0], [1], [0, 0, 1, 1], [], []>} : vector<128x4xbf16>, vector<4x4xbf16>, vector<128x4xf32> -> vector<128x4xf32>
    %19 = arith.addf %10, %18 : vector<128x4xf32>
    %c0_i32_13 = arith.constant 0 : i32
    %20 = arith.addi %0, %c0_i32_13 : i32
    %c0_14 = arith.constant 0 : index
    %21 = arith.index_cast %20 : i32 to index
    %c2 = arith.constant 2 : index
    %c0_15 = arith.constant 0 : index
    %22 = vector.load %arg2[%c0_14, %21, %c2, %c0_15] : memref<1x18x18x4xbf16, #tpu.memory_space<vmem>>, vector<1x8x16x4xbf16>
    %23 = vector.shape_cast %22 : vector<1x8x16x4xbf16> to vector<8x16x4xbf16>
    %24 = vector.shape_cast %23 : vector<8x16x4xbf16> to vector<128x4xbf16>
    %c2_16 = arith.constant 2 : index
    %c0_17 = arith.constant 0 : index
    %c0_18 = arith.constant 0 : index
    %25 = vector.load %arg3[%c2_16, %c0_17, %c0_18] : memref<9x4x4xbf16, #tpu.memory_space<vmem>>, vector<1x4x4xbf16>
    %26 = vector.shape_cast %25 : vector<1x4x4xbf16> to vector<4x4xbf16>
    %cst_19 = arith.constant dense<0.000000e+00> : vector<128x4xf32>
    %27 = tpu.matmul %24, %26, %cst_19 {dimension_numbers = #tpu.dot_dimension_numbers<[1], [0], [0], [1], [0, 0, 1, 1], [], []>} : vector<128x4xbf16>, vector<4x4xbf16>, vector<128x4xf32> -> vector<128x4xf32>
    %28 = arith.addf %19, %27 : vector<128x4xf32>
    %c1_i32 = arith.constant 1 : i32
    %29 = arith.addi %0, %c1_i32 : i32
    %c0_20 = arith.constant 0 : index
    %30 = arith.index_cast %29 : i32 to index
    %c0_21 = arith.constant 0 : index
    %c0_22 = arith.constant 0 : index
    %31 = vector.load %arg2[%c0_20, %30, %c0_21, %c0_22] : memref<1x18x18x4xbf16, #tpu.memory_space<vmem>>, vector<1x8x16x4xbf16>
    %32 = vector.shape_cast %31 : vector<1x8x16x4xbf16> to vector<8x16x4xbf16>
    %33 = vector.shape_cast %32 : vector<8x16x4xbf16> to vector<128x4xbf16>
    %c3 = arith.constant 3 : index
    %c0_23 = arith.constant 0 : index
    %c0_24 = arith.constant 0 : index
    %34 = vector.load %arg3[%c3, %c0_23, %c0_24] : memref<9x4x4xbf16, #tpu.memory_space<vmem>>, vector<1x4x4xbf16>
    %35 = vector.shape_cast %34 : vector<1x4x4xbf16> to vector<4x4xbf16>
    %cst_25 = arith.constant dense<0.000000e+00> : vector<128x4xf32>
    %36 = tpu.matmul %33, %35, %cst_25 {dimension_numbers = #tpu.dot_dimension_numbers<[1], [0], [0], [1], [0, 0, 1, 1], [], []>} : vector<128x4xbf16>, vector<4x4xbf16>, vector<128x4xf32> -> vector<128x4xf32>
    %37 = arith.addf %28, %36 : vector<128x4xf32>
    %c1_i32_26 = arith.constant 1 : i32
    %38 = arith.addi %0, %c1_i32_26 : i32
    %c0_27 = arith.constant 0 : index
    %39 = arith.index_cast %38 : i32 to index
    %c1_28 = arith.constant 1 : index
    %c0_29 = arith.constant 0 : index
    %40 = vector.load %arg2[%c0_27, %39, %c1_28, %c0_29] : memref<1x18x18x4xbf16, #tpu.memory_space<vmem>>, vector<1x8x16x4xbf16>
    %41 = vector.shape_cast %40 : vector<1x8x16x4xbf16> to vector<8x16x4xbf16>
    %42 = vector.shape_cast %41 : vector<8x16x4xbf16> to vector<128x4xbf16>
    %c4 = arith.constant 4 : index
    %c0_30 = arith.constant 0 : index
    %c0_31 = arith.constant 0 : index
    %43 = vector.load %arg3[%c4, %c0_30, %c0_31] : memref<9x4x4xbf16, #tpu.memory_space<vmem>>, vector<1x4x4xbf16>
    %44 = vector.shape_cast %43 : vector<1x4x4xbf16> to vector<4x4xbf16>
    %cst_32 = arith.constant dense<0.000000e+00> : vector<128x4xf32>
    %45 = tpu.matmul %42, %44, %cst_32 {dimension_numbers = #tpu.dot_dimension_numbers<[1], [0], [0], [1], [0, 0, 1, 1], [], []>} : vector<128x4xbf16>, vector<4x4xbf16>, vector<128x4xf32> -> vector<128x4xf32>
    %46 = arith.addf %37, %45 : vector<128x4xf32>
    %c1_i32_33 = arith.constant 1 : i32
    %47 = arith.addi %0, %c1_i32_33 : i32
    %c0_34 = arith.constant 0 : index
    %48 = arith.index_cast %47 : i32 to index
    %c2_35 = arith.constant 2 : index
    %c0_36 = arith.constant 0 : index
    %49 = vector.load %arg2[%c0_34, %48, %c2_35, %c0_36] : memref<1x18x18x4xbf16, #tpu.memory_space<vmem>>, vector<1x8x16x4xbf16>
    %50 = vector.shape_cast %49 : vector<1x8x16x4xbf16> to vector<8x16x4xbf16>
    %51 = vector.shape_cast %50 : vector<8x16x4xbf16> to vector<128x4xbf16>
    %c5 = arith.constant 5 : index
    %c0_37 = arith.constant 0 : index
    %c0_38 = arith.constant 0 : index
    %52 = vector.load %arg3[%c5, %c0_37, %c0_38] : memref<9x4x4xbf16, #tpu.memory_space<vmem>>, vector<1x4x4xbf16>
    %53 = vector.shape_cast %52 : vector<1x4x4xbf16> to vector<4x4xbf16>
    %cst_39 = arith.constant dense<0.000000e+00> : vector<128x4xf32>
    %54 = tpu.matmul %51, %53, %cst_39 {dimension_numbers = #tpu.dot_dimension_numbers<[1], [0], [0], [1], [0, 0, 1, 1], [], []>} : vector<128x4xbf16>, vector<4x4xbf16>, vector<128x4xf32> -> vector<128x4xf32>
    %55 = arith.addf %46, %54 : vector<128x4xf32>
    %c2_i32 = arith.constant 2 : i32
    %56 = arith.addi %0, %c2_i32 : i32
    %c0_40 = arith.constant 0 : index
    %57 = arith.index_cast %56 : i32 to index
    %c0_41 = arith.constant 0 : index
    %c0_42 = arith.constant 0 : index
    %58 = vector.load %arg2[%c0_40, %57, %c0_41, %c0_42] : memref<1x18x18x4xbf16, #tpu.memory_space<vmem>>, vector<1x8x16x4xbf16>
    %59 = vector.shape_cast %58 : vector<1x8x16x4xbf16> to vector<8x16x4xbf16>
    %60 = vector.shape_cast %59 : vector<8x16x4xbf16> to vector<128x4xbf16>
    %c6 = arith.constant 6 : index
    %c0_43 = arith.constant 0 : index
    %c0_44 = arith.constant 0 : index
    %61 = vector.load %arg3[%c6, %c0_43, %c0_44] : memref<9x4x4xbf16, #tpu.memory_space<vmem>>, vector<1x4x4xbf16>
    %62 = vector.shape_cast %61 : vector<1x4x4xbf16> to vector<4x4xbf16>
    %cst_45 = arith.constant dense<0.000000e+00> : vector<128x4xf32>
    %63 = tpu.matmul %60, %62, %cst_45 {dimension_numbers = #tpu.dot_dimension_numbers<[1], [0], [0], [1], [0, 0, 1, 1], [], []>} : vector<128x4xbf16>, vector<4x4xbf16>, vector<128x4xf32> -> vector<128x4xf32>
    %64 = arith.addf %55, %63 : vector<128x4xf32>
    %c2_i32_46 = arith.constant 2 : i32
    %65 = arith.addi %0, %c2_i32_46 : i32
    %c0_47 = arith.constant 0 : index
    %66 = arith.index_cast %65 : i32 to index
    %c1_48 = arith.constant 1 : index
    %c0_49 = arith.constant 0 : index
    %67 = vector.load %arg2[%c0_47, %66, %c1_48, %c0_49] : memref<1x18x18x4xbf16, #tpu.memory_space<vmem>>, vector<1x8x16x4xbf16>
    %68 = vector.shape_cast %67 : vector<1x8x16x4xbf16> to vector<8x16x4xbf16>
    %69 = vector.shape_cast %68 : vector<8x16x4xbf16> to vector<128x4xbf16>
    %c7 = arith.constant 7 : index
    %c0_50 = arith.constant 0 : index
    %c0_51 = arith.constant 0 : index
    %70 = vector.load %arg3[%c7, %c0_50, %c0_51] : memref<9x4x4xbf16, #tpu.memory_space<vmem>>, vector<1x4x4xbf16>
    %71 = vector.shape_cast %70 : vector<1x4x4xbf16> to vector<4x4xbf16>
    %cst_52 = arith.constant dense<0.000000e+00> : vector<128x4xf32>
    %72 = tpu.matmul %69, %71, %cst_52 {dimension_numbers = #tpu.dot_dimension_numbers<[1], [0], [0], [1], [0, 0, 1, 1], [], []>} : vector<128x4xbf16>, vector<4x4xbf16>, vector<128x4xf32> -> vector<128x4xf32>
    %73 = arith.addf %64, %72 : vector<128x4xf32>
    %c2_i32_53 = arith.constant 2 : i32
    %74 = arith.addi %0, %c2_i32_53 : i32
    %c0_54 = arith.constant 0 : index
    %75 = arith.index_cast %74 : i32 to index
    %c2_55 = arith.constant 2 : index
    %c0_56 = arith.constant 0 : index
    %76 = vector.load %arg2[%c0_54, %75, %c2_55, %c0_56] : memref<1x18x18x4xbf16, #tpu.memory_space<vmem>>, vector<1x8x16x4xbf16>
    %77 = vector.shape_cast %76 : vector<1x8x16x4xbf16> to vector<8x16x4xbf16>
    %78 = vector.shape_cast %77 : vector<8x16x4xbf16> to vector<128x4xbf16>
    %c8 = arith.constant 8 : index
    %c0_57 = arith.constant 0 : index
    %c0_58 = arith.constant 0 : index
    %79 = vector.load %arg3[%c8, %c0_57, %c0_58] : memref<9x4x4xbf16, #tpu.memory_space<vmem>>, vector<1x4x4xbf16>
    %80 = vector.shape_cast %79 : vector<1x4x4xbf16> to vector<4x4xbf16>
    %cst_59 = arith.constant dense<0.000000e+00> : vector<128x4xf32>
    %81 = tpu.matmul %78, %80, %cst_59 {dimension_numbers = #tpu.dot_dimension_numbers<[1], [0], [0], [1], [0, 0, 1, 1], [], []>} : vector<128x4xbf16>, vector<4x4xbf16>, vector<128x4xf32> -> vector<128x4xf32>
    %82 = arith.addf %73, %81 : vector<128x4xf32>
    %cst_60 = arith.constant dense<0.000000e+00> : vector<4xf32>
    %83 = vector.multi_reduction <add>, %82, %cst_60 [0] : vector<128x4xf32> to vector<4xf32>
    %84 = vector.shape_cast %83 : vector<4xf32> to vector<1x4xf32>
    %c0_61 = arith.constant 0 : index
    %c0_62 = arith.constant 0 : index
    %c0_63 = arith.constant 0 : index
    %c0_64 = arith.constant 0 : index
    %85 = vector.load %arg5[%c0_61, %c0_62, %c0_63, %c0_64] : memref<1x1x2x4xf32, #tpu.memory_space<vmem>>, vector<1x1x1x4xf32>
    %86 = vector.shape_cast %85 : vector<1x1x1x4xf32> to vector<1x4xf32>
    %87 = vector.shape_cast %84 : vector<1x4xf32> to vector<1x1x1x4xf32>
    tpu.vector_store %arg5[%c0_61, %c0_62, %c0_63, %c0_64], %87 {strides = array<i32>} : memref<1x1x2x4xf32, #tpu.memory_space<vmem>>, vector<1x1x1x4xf32>,
    %88 = arith.mulf %82, %82 : vector<128x4xf32>
    %cst_65 = arith.constant dense<0.000000e+00> : vector<4xf32>
    %89 = vector.multi_reduction <add>, %88, %cst_65 [0] : vector<128x4xf32> to vector<4xf32>
    %90 = vector.shape_cast %89 : vector<4xf32> to vector<1x4xf32>
    %c0_66 = arith.constant 0 : index
    %c0_67 = arith.constant 0 : index
    %c1_68 = arith.constant 1 : index
    %c0_69 = arith.constant 0 : index
    %91 = vector.load %arg5[%c0_66, %c0_67, %c1_68, %c0_69] : memref<1x1x2x4xf32, #tpu.memory_space<vmem>>, vector<1x1x1x4xf32>
    %92 = vector.shape_cast %91 : vector<1x1x1x4xf32> to vector<1x4xf32>
    %93 = vector.shape_cast %90 : vector<1x4xf32> to vector<1x1x1x4xf32>
    tpu.vector_store %arg5[%c0_66, %c0_67, %c1_68, %c0_69], %93 {strides = array<i32>} : memref<1x1x2x4xf32, #tpu.memory_space<vmem>>, vector<1x1x1x4xf32>,
    %94 = vector.shape_cast %82 : vector<128x4xf32> to vector<8x16x4xf32>
    %95 = arith.truncf %94 : vector<8x16x4xf32> to vector<8x16x4xbf16>
    %c0_70 = arith.constant 0 : index
    %c0_71 = arith.constant 0 : index
    %c0_72 = arith.constant 0 : index
    %c0_73 = arith.constant 0 : index
    %96 = vector.load %arg4[%c0_70, %c0_71, %c0_72, %c0_73] : memref<1x8x16x4xbf16, #tpu.memory_space<vmem>>, vector<1x8x16x4xbf16>
    %97 = vector.shape_cast %96 : vector<1x8x16x4xbf16> to vector<8x16x4xbf16>
    %98 = vector.shape_cast %95 : vector<8x16x4xbf16> to vector<1x8x16x4xbf16>
    tpu.vector_store %arg4[%c0_70, %c0_71, %c0_72, %c0_73], %98 {strides = array<i32>} : memref<1x8x16x4xbf16, #tpu.memory_space<vmem>>, vector<1x8x16x4xbf16>,
    return
  }
  func.func @transform_0(%arg0: i32, %arg1: i32) -> (i32, i32, i32, i32) {
    %c0_i32 = arith.constant 0 : i32
    %c0_i32_0 = arith.constant 0 : i32
    %c0_i32_1 = arith.constant 0 : i32
    %c0_i32_2 = arith.constant 0 : i32
    return %arg0, %c0_i32, %c0_i32_0, %c0_i32_1 : i32, i32, i32, i32
  }
  func.func @transform_1(%arg0: i32, %arg1: i32) -> (i32, i32, i32) {
    %c0_i32 = arith.constant 0 : i32
    %c0_i32_0 = arith.constant 0 : i32
    %c0_i32_1 = arith.constant 0 : i32
    %c0_i32_2 = arith.constant 0 : i32
    return %c0_i32, %c0_i32_0, %c0_i32_1 : i32, i32, i32
  }
  func.func @transform_2(%arg0: i32, %arg1: i32) -> (i32, i32, i32, i32) {
    %c0_i32 = arith.constant 0 : i32
    %c0_i32_0 = arith.constant 0 : i32
    %c0_i32_1 = arith.constant 0 : i32
    return %arg0, %arg1, %c0_i32, %c0_i32_0 : i32, i32, i32, i32
  }
  func.func @transform_3(%arg0: i32, %arg1: i32) -> (i32, i32, i32, i32) {
    %c0_i32 = arith.constant 0 : i32
    %c0_i32_0 = arith.constant 0 : i32
    %c0_i32_1 = arith.constant 0 : i32
    return %arg0, %arg1, %c0_i32, %c0_i32_0 : i32, i32, i32, i32
  }
}

</mosaic_0001>

<llo_original>
// kernel: tpu_custom_call.1
$region0: #{tpu_custom_call.1}
  #allocation0 [shape = 'u32[]', space=smem, size = 0x4, offset = 0x4, fixed_abs, tag = 'smem constant byte address 0x4 - core index']
  #allocation1 [shape = 'u32[144,128]{1,0:T(1,128)}', space=vmem, size = 0x12000, scoped, tag = 'internal scratch']
  %s0 = inlined_call_operand.vmem [shape: bf16[2,18,18,4], index: 0, kind: input, shape index: {}]
  %s1 = inlined_call_operand.vmem [shape: bf16[9,4,4], index: 1, kind: input, shape index: {}]
  %s2 = inlined_call_operand.vmem [shape: bf16[2,16,16,4], index: 2, kind: output, shape index: {0}]
  %s3 = inlined_call_operand.hbm [shape: f32[2,2,2,4], index: 3, kind: output, shape index: {1}]
  %4 = xla_tuple %s2, %s3
  %s5 = sld [smem:[#allocation0]]
  $region49: #{tpu_custom_call.1} parent=0
    _
  %s7 = ssub.s32 1, %s5
  %s8 = scalar_select 0, %s7, %s5
  $region1: #{tpu_custom_call.1} parent=0
    #allocation2 [shape = 'u8[2048]{0}', space=vmem, size = 0x800, scoped, tag = 'output window, operand 1']
    #allocation3 [shape = 's32[2]{0}', space=sflag, size = 0x8, scoped, tag = 'scoped memory for tpu_custom_call.1']
    %9 = vsyncpa [#allocation3], 0
    %s10 = scalar_lea.sflag [#allocation3], 1
    %11 = vsyncpa %s10, 0
    loop: start=0, step=1, limit=6
    $region2: #{tpu_custom_call.1} parent=1 // loop_pre_header
      _
    $region3: #{tpu_custom_call.1} parent=1 // loop_header
      %s13 = sphi 0, %s17
      %p14 = scmp.ge.s32.totalorder %s13, 6
      %s20 = sphi 0, %s32
      %s21 = sphi 0, %s28
      %s22 = sphi 0, %s20
      %s23 = sphi 0, %s21
      %s24 = sphi 0, %s22
      %s25 = sphi 0, %s23
      %s35 = sphi 0, %s37
      %s38 = sphi 0, %s35
      %s39 = sphi 0, %s38
      %s55 = sphi 0, %s39
      %s59 = sphi 0, %s59
      %s61 = sphi 0, %s59
      %s62 = sphi 0, %s61
      %s76 = sphi 0, %s62
      %s84 = sphi 0, %s86
      %s87 = sphi 0, %s84
      %s88 = sphi 0, %s87
      %s104 = sphi 0, %s88
      %s112 = sphi 0, %s114
      %s115 = sphi 0, %s112
      %s116 = sphi 0, %s115
      %s132 = sphi 0, %s116
    $region4: #{tpu_custom_call.1} parent=1 // loop_header_branch
      %16 = sbr.rel (%p14) target = $region8
    $region5: #{tpu_custom_call.1} parent=1 // loop_body
      %s18 = ssub.s32 %s13, 1
      %s19 = ssub.s32 %s13, 2
      %s26 = sadd.s32 1, %s21
      %p27 = scmp.ge.s32.totalorder %s26, 2
      %s28 = scalar_select %p27, 0, %s26
      %s29 = sadd.s32 1, %s20
      %s30 = scalar_select %p27, %s29, %s20
      %p31 = scmp.ge.s32.totalorder %s30, 2
      %s32 = scalar_select %p31, 0, %s30
      %s33 = ssub.s32 %s20, %s32
      %p34 = scmp.eq.s32.totalorder %s33, 0
      %s36 = sadd.s32 %s35, 1
      %s37 = scalar_select %p34, %s35, %s36
      %p40 = pneg %p34
      %p41 = scmp.eq.s32.totalorder %s13, 3
      %p42 = por %p40, %p41
      %p43 = scmp.ne.s32.totalorder %s35, %s38
      %p44 = scmp.eq.s32.totalorder %s13, 0
      %p45 = por %p43, %p44
      %p46 = scmp.ne.s32.totalorder %s35, %s38
      %p47 = scmp.eq.s32.totalorder %s18, 3
      %p48 = por %p46, %p47
      %p49 = scmp.ne.s32.totalorder %s38, %s39
      %p50 = scmp.eq.s32.totalorder %s18, 0
      %p51 = por %p49, %p50
      %p52 = scmp.ne.s32.totalorder %s38, %s39
      %p53 = scmp.eq.s32.totalorder %s19, 3
      %p54 = por %p52, %p53
      %p56 = scmp.ne.s32.totalorder %s39, %s55
      %p57 = scmp.eq.s32.totalorder %s19, 0
      %p58 = por %p56, %p57
      %s60 = sadd.s32 %s59, 1
      %p63 = scmp.eq.s32.totalorder %s13, 3
      %p64 = scmp.ne.s32.totalorder %s59, %s61
      %p65 = scmp.eq.s32.totalorder %s13, 0
      %p66 = por %p64, %p65
      %p67 = scmp.ne.s32.totalorder %s59, %s61
      %p68 = scmp.eq.s32.totalorder %s18, 3
      %p69 = por %p67, %p68
      %p70 = scmp.ne.s32.totalorder %s61, %s62
      %p71 = scmp.eq.s32.totalorder %s18, 0
      %p72 = por %p70, %p71
      %p73 = scmp.ne.s32.totalorder %s61, %s62
      %p74 = scmp.eq.s32.totalorder %s19, 3
      %p75 = por %p73, %p74
      %p77 = scmp.ne.s32.totalorder %s62, %s76
      %p78 = scmp.eq.s32.totalorder %s19, 0
      %p79 = por %p77, %p78
      %s80 = ssub.s32 %s20, %s32
      %s81 = ssub.s32 %s21, %s28
      %s82 = sor.u32 %s80, %s81
      %p83 = scmp.eq.s32.totalorder %s82, 0
      %s85 = sadd.s32 %s84, 1
      %s86 = scalar_select %p83, %s84, %s85
      %p89 = pneg %p83
      %p90 = scmp.eq.s32.totalorder %s13, 3
      %p91 = por %p89, %p90
      %p92 = scmp.ne.s32.totalorder %s84, %s87
      %p93 = scmp.eq.s32.totalorder %s13, 0
      %p94 = por %p92, %p93
      %p95 = scmp.ne.s32.totalorder %s84, %s87
      %p96 = scmp.eq.s32.totalorder %s18, 3
      %p97 = por %p95, %p96
      %p98 = scmp.ne.s32.totalorder %s87, %s88
      %p99 = scmp.eq.s32.totalorder %s18, 0
      %p100 = por %p98, %p99
      %p101 = scmp.ne.s32.totalorder %s87, %s88
      %p102 = scmp.eq.s32.totalorder %s19, 3
      %p103 = por %p101, %p102
      %p105 = scmp.ne.s32.totalorder %s88, %s104
      %p106 = scmp.eq.s32.totalorder %s19, 0
      %p107 = por %p105, %p106
      %s108 = ssub.s32 %s20, %s32
      %s109 = ssub.s32 %s21, %s28
      %s110 = sor.u32 %s108, %s109
      %p111 = scmp.eq.s32.totalorder %s110, 0
      %s113 = sadd.s32 %s112, 1
      %s114 = scalar_select %p111, %s112, %s113
      %p117 = pneg %p111
      %p118 = scmp.eq.s32.totalorder %s13, 3
      %p119 = por %p117, %p118
      %p120 = scmp.ne.s32.totalorder %s112, %s115
      %p121 = scmp.eq.s32.totalorder %s13, 0
      %p122 = por %p120, %p121
      %p123 = scmp.ne.s32.totalorder %s112, %s115
      %p124 = scmp.eq.s32.totalorder %s18, 3
      %p125 = por %p123, %p124
      %p126 = scmp.ne.s32.totalorder %s115, %s116
      %p127 = scmp.eq.s32.totalorder %s18, 0
      %p128 = por %p126, %p127
      %p129 = scmp.ne.s32.totalorder %s115, %s116
      %p130 = scmp.eq.s32.totalorder %s19, 3
      %p131 = por %p129, %p130
      %p133 = scmp.ne.s32.totalorder %s116, %s132
      %p134 = scmp.eq.s32.totalorder %s19, 0
      %p135 = por %p133, %p134
      %p136 = scmp.le.s32.totalorder 1, %s13
      %p137 = scmp.lt.s32.totalorder %s13, 5
      %p138 = pnand %p136, %p137
      %p139 = pneg %p138
      // Predicated region
      $region9: #{tpu_custom_call.1} parent=5 // pred_check
        _
      $region10: #{tpu_custom_call.1} parent=5 // pred_check_branch
        %141 = sbr.rel (%p138) target = $region12
      $region11: #{tpu_custom_call.1} parent=5 // pred_region
        %s142 = ssub.s32 %s13, 1
        // Predicated region
        $region13: #{tpu_custom_call.1} parent=11 // pred_check
          %p143 = pneg %p72
        $region14: #{tpu_custom_call.1} parent=11 // pred_check_branch
          %145 = sbr.rel (%p143) target = $region16
        $region15: #{tpu_custom_call.1} parent=11 // pred_region
          _
        $region16: #{tpu_custom_call.1} parent=11 // pred_fallthru
          _
      $region12: #{tpu_custom_call.1} parent=5 // pred_fallthru
        _
      %p146 = scmp.lt.s32.totalorder %s13, 4
      // Predicated region
      $region17: #{tpu_custom_call.1} parent=5 // pred_check
        %p147 = pneg %p146
      $region18: #{tpu_custom_call.1} parent=5 // pred_check_branch
        %149 = sbr.rel (%p147) target = $region20
      $region19: #{tpu_custom_call.1} parent=5 // pred_region
        // Predicated region
        $region21: #{tpu_custom_call.1} parent=19 // pred_check
          %p150 = pneg %p45
        $region22: #{tpu_custom_call.1} parent=19 // pred_check_branch
          %152 = sbr.rel (%p150) target = $region24
        $region23: #{tpu_custom_call.1} parent=19 // pred_region
          %p153 = scmp.lt.s32.totalorder %s20, 1
          %s154 = scalar_select %p153, %s20, 1
          %s155 = smul.addr %s154, 54
          %s156 = smul.addr %s155, 4
          %s157 = scalar_lea.vmem %s0, %s156
        $region24: #{tpu_custom_call.1} parent=19 // pred_fallthru
          _
      $region20: #{tpu_custom_call.1} parent=5 // pred_fallthru
        _
      %p158 = scmp.le.s32.totalorder 1, %s13
      %p159 = scmp.lt.s32.totalorder %s13, 5
      %p160 = pnand %p158, %p159
      %p161 = pneg %p160
      // Predicated region
      $region25: #{tpu_custom_call.1} parent=5 // pred_check
        _
      $region26: #{tpu_custom_call.1} parent=5 // pred_check_branch
        %163 = sbr.rel (%p160) target = $region28
      $region27: #{tpu_custom_call.1} parent=5 // pred_region
        %s164 = ssub.s32 %s13, 1
        %p165 = scmp.lt.s32.totalorder %s22, 1
        %s166 = scalar_select %p165, %s22, 1
        %s167 = smul.addr %s166, 54
        %s168 = smul.addr %s167, 4
        %s169 = scalar_lea.vmem %s0, %s168
        %p170 = pneg %p51
        %p171 = pneg %p48
        %p172 = pneg %p72
        %p173 = pneg %p69
        %p174 = pneg %p100
        %p175 = pneg %p97
        %s176 = smul.u32 8, %s23
        %p177 = scmp.lt.s32.totalorder %s22, 1
        %s178 = scalar_select %p177, %s22, 1
        %p179 = scmp.lt.s32.totalorder %s176, 15
        %s180 = scalar_select %p179, %s176, 15
        %s181 = smul.addr %s180, 2
        %s182 = smul.addr %s178, 32
        %s183 = sadd.s32 %s181, %s182
        %s184 = smul.addr %s183, 4
        %s185 = scalar_lea.vmem %s2, %s184
        %p186 = pneg %p128
        %p187 = pneg %p125
        %s188 = sand.u32 %s115, 1
        %s189 = scalar_lea.sflag [#allocation3], %s188
        %s190 = sand.u32 %s115, 1
        %s191 = smul.addr %s190, 2
        %s192 = scalar_lea.vmem [#allocation2], %s191
        %p193 = scmp.lt.s32.totalorder %s22, 1
        %s194 = scalar_select %p193, %s22, 1
        %s195 = smul.addr %s194, 54
        %s196 = smul.addr %s195, 4
        %s197 = scalar_lea.vmem %s0, %s196
        %s198 = smul.u32 8, %s23
        %p199 = scmp.lt.s32.totalorder %s22, 1
        %s200 = scalar_select %p199, %s22, 1
        %p201 = scmp.lt.s32.totalorder %s198, 15
        %s202 = scalar_select %p201, %s198, 15
        %s203 = smul.addr %s202, 2
        %s204 = smul.addr %s200, 32
        %s205 = sadd.s32 %s203, %s204
        %s206 = smul.addr %s205, 4
        %s207 = scalar_lea.vmem %s2, %s206
        %s208 = smul.u32 8, %s23
        %s210 = smul.u32 %s23, 8
        %s211 = smul.u32 %s210, 3
        %s212 = smul.addr %s211, 4
        %s213 = scalar_lea.vmem %s197, %s212
        %v214 = vld [vmem:[%s213] sm:$0xf]
        %v215 = vld [vmem:[%s213 + $0x4] sm:$0xf]
        %v216 = vld [vmem:[%s213 + $0xc] sm:$0xf]
        %v217 = vld [vmem:[%s213 + $0x10] sm:$0xf]
        %v218 = vld [vmem:[%s213 + $0x18] sm:$0xf]
        %v219 = vld [vmem:[%s213 + $0x1c] sm:$0xf]
        %v220 = vld [vmem:[%s213 + $0x24] sm:$0xf]
        %v221 = vld [vmem:[%s213 + $0x28] sm:$0xf]
        %v222 = vld [vmem:[%s213 + $0x30] sm:$0xf]
        %v223 = vld [vmem:[%s213 + $0x34] sm:$0xf]
        %v224 = vld [vmem:[%s213 + $0x3c] sm:$0xf]
        %v225 = vld [vmem:[%s213 + $0x40] sm:$0xf]
        %v226 = vld [vmem:[%s213 + $0x48] sm:$0xf]
        %v227 = vld [vmem:[%s213 + $0x4c] sm:$0xf]
        %v228 = vld [vmem:[%s213 + $0x54] sm:$0xf]
        %v229 = vld [vmem:[%s213 + $0x58] sm:$0xf]
        %v230 = vld [vmem:[%s1] sm:$0x3]
        %v231 = vld [vmem:[%s213 + $0x8] sm:$0x1]
        %v232 = vld [vmem:[%s213 + $0x14] sm:$0x1]
        %v233 = vld [vmem:[%s213 + $0x20] sm:$0x1]
        %v234 = vld [vmem:[%s213 + $0x2c] sm:$0x1]
        %v235 = vld [vmem:[%s213 + $0x38] sm:$0x1]
        %v236 = vld [vmem:[%s213 + $0x44] sm:$0x1]
        %v237 = vld [vmem:[%s213 + $0x50] sm:$0x1]
        %v238 = vld [vmem:[%s213 + $0x5c] sm:$0x1]
        %vm239 = vsmask.f32 3328
        %vm240 = vsmask.f32 7440
        %vm241 = vmor %vm239, %vm240
        %v243 = vshrl.u32 %v214, 16
        %v245 = vrot.slane %v243, 4
        %v246 = vshll.u32 %v214, 16
        %v248 = vrot.slane %v246, 5
        %v249 = vor.u32 %v245, %v248
        %v250 = vrot.slane %v249, 4
        %v252 = vshll.u32 %v215, 16
        %v254 = vrot.slane %v252, 5
        %v255 = vsel %vm241, %v250, %v254
        %v256 = vshrl.u32 %v215, 16
        %v258 = vrot.slane %v256, 4
        %v259 = vor.u32 %v258, %v254
        %v260 = vrot.slane %v259, 4
        %v262 = vshll.u32 %v231, 16
        %v264 = vrot.slane %v262, 5
        %v265 = vsel %vm241, %v260, %v264
        %v267 = vshrl.u32 %v216, 16
        %v269 = vrot.slane %v267, 4
        %v270 = vshll.u32 %v216, 16
        %v272 = vrot.slane %v270, 5
        %v273 = vor.u32 %v269, %v272
        %v274 = vrot.slane %v273, 4
        %v276 = vshll.u32 %v217, 16
        %v278 = vrot.slane %v276, 5
        %v279 = vsel %vm241, %v274, %v278
        %v280 = vshrl.u32 %v217, 16
        %v282 = vrot.slane %v280, 4
        %v283 = vor.u32 %v282, %v278
        %v284 = vrot.slane %v283, 4
        %v286 = vshll.u32 %v232, 16
        %v288 = vrot.slane %v286, 5
        %v289 = vsel %vm241, %v284, %v288
        %v291 = vshrl.u32 %v218, 16
        %v293 = vrot.slane %v291, 4
        %v294 = vshll.u32 %v218, 16
        %v296 = vrot.slane %v294, 5
        %v297 = vor.u32 %v293, %v296
        %v298 = vrot.slane %v297, 4
        %v300 = vshll.u32 %v219, 16
        %v302 = vrot.slane %v300, 5
        %v303 = vsel %vm241, %v298, %v302
        %v304 = vshrl.u32 %v219, 16
        %v306 = vrot.slane %v304, 4
        %v307 = vor.u32 %v306, %v302
        %v308 = vrot.slane %v307, 4
        %v310 = vshll.u32 %v233, 16
        %v312 = vrot.slane %v310, 5
        %v313 = vsel %vm241, %v308, %v312
        %v315 = vshrl.u32 %v220, 16
        %v317 = vrot.slane %v315, 4
        %v318 = vshll.u32 %v220, 16
        %v320 = vrot.slane %v318, 5
        %v321 = vor.u32 %v317, %v320
        %v322 = vrot.slane %v321, 4
        %v324 = vshll.u32 %v221, 16
        %v326 = vrot.slane %v324, 5
        %v327 = vsel %vm241, %v322, %v326
        %v328 = vshrl.u32 %v221, 16
        %v330 = vrot.slane %v328, 4
        %v331 = vor.u32 %v330, %v326
        %v332 = vrot.slane %v331, 4
        %v334 = vshll.u32 %v234, 16
        %v336 = vrot.slane %v334, 5
        %v337 = vsel %vm241, %v332, %v336
        %v339 = vshrl.u32 %v222, 16
        %v341 = vrot.slane %v339, 4
        %v342 = vshll.u32 %v222, 16
        %v344 = vrot.slane %v342, 5
        %v345 = vor.u32 %v341, %v344
        %v346 = vrot.slane %v345, 4
        %v348 = vshll.u32 %v223, 16
        %v350 = vrot.slane %v348, 5
        %v351 = vsel %vm241, %v346, %v350
        %v352 = vshrl.u32 %v223, 16
        %v354 = vrot.slane %v352, 4
        %v355 = vor.u32 %v354, %v350
        %v356 = vrot.slane %v355, 4
        %v358 = vshll.u32 %v235, 16
        %v360 = vrot.slane %v358, 5
        %v361 = vsel %vm241, %v356, %v360
        %v363 = vshrl.u32 %v224, 16
        %v365 = vrot.slane %v363, 4
        %v366 = vshll.u32 %v224, 16
        %v368 = vrot.slane %v366, 5
        %v369 = vor.u32 %v365, %v368
        %v370 = vrot.slane %v369, 4
        %v372 = vshll.u32 %v225, 16
        %v374 = vrot.slane %v372, 5
        %v375 = vsel %vm241, %v370, %v374
        %v376 = vshrl.u32 %v225, 16
        %v378 = vrot.slane %v376, 4
        %v379 = vor.u32 %v378, %v374
        %v380 = vrot.slane %v379, 4
        %v382 = vshll.u32 %v236, 16
        %v384 = vrot.slane %v382, 5
        %v385 = vsel %vm241, %v380, %v384
        %v387 = vshrl.u32 %v226, 16
        %v389 = vrot.slane %v387, 4
        %v390 = vshll.u32 %v226, 16
        %v392 = vrot.slane %v390, 5
        %v393 = vor.u32 %v389, %v392
        %v394 = vrot.slane %v393, 4
        %v396 = vshll.u32 %v227, 16
        %v398 = vrot.slane %v396, 5
        %v399 = vsel %vm241, %v394, %v398
        %v400 = vshrl.u32 %v227, 16
        %v402 = vrot.slane %v400, 4
        %v403 = vor.u32 %v402, %v398
        %v404 = vrot.slane %v403, 4
        %v406 = vshll.u32 %v237, 16
        %v408 = vrot.slane %v406, 5
        %v409 = vsel %vm241, %v404, %v408
        %v411 = vshrl.u32 %v228, 16
        %v413 = vrot.slane %v411, 4
        %v414 = vshll.u32 %v228, 16
        %v416 = vrot.slane %v414, 5
        %v417 = vor.u32 %v413, %v416
        %v418 = vrot.slane %v417, 4
        %v420 = vshll.u32 %v229, 16
        %v422 = vrot.slane %v420, 5
        %v423 = vsel %vm241, %v418, %v422
        %v424 = vshrl.u32 %v229, 16
        %v426 = vrot.slane %v424, 4
        %v427 = vor.u32 %v426, %v422
        %v428 = vrot.slane %v427, 4
        %v430 = vshll.u32 %v238, 16
        %v432 = vrot.slane %v430, 5
        %v433 = vsel %vm241, %v428, %v432
        %s434 = scalar_lea.vmem %s1, 2
        %v435 = vld [vmem:[%s434] sm:$0x3]
        %v436 = vunpack.c.l.b16 %v255
        %v437 = vunpack.c.l.b16 %v265
        %v438 = vunpack.c.l.b16 %v279
        %v439 = vunpack.c.l.b16 %v289
        %v440 = vunpack.c.l.b16 %v303
        %v441 = vunpack.c.l.b16 %v313
        %v442 = vunpack.c.l.b16 %v327
        %v443 = vunpack.c.l.b16 %v337
        %v444 = vunpack.c.l.b16 %v351
        %v445 = vunpack.c.l.b16 %v361
        %v446 = vunpack.c.l.b16 %v375
        %v447 = vunpack.c.l.b16 %v385
        %v448 = vunpack.c.l.b16 %v399
        %v449 = vunpack.c.l.b16 %v409
        %v450 = vunpack.c.l.b16 %v423
        %v451 = vunpack.c.l.b16 %v433
        %v452 = vpack.c.b16 %v437, %v436
        %v453 = vpack.c.b16 %v439, %v438
        %v454 = vpack.c.b16 %v441, %v440
        %v455 = vpack.c.b16 %v443, %v442
        %v456 = vpack.c.b16 %v445, %v444
        %v457 = vpack.c.b16 %v447, %v446
        %v458 = vpack.c.b16 %v449, %v448
        %v459 = vpack.c.b16 %v451, %v450
        %vm460 = vcmask 31744
        %v462 = vsel %vm460, %v452, 0
        %v465 = vsel %vm460, %v453, 0
        %v468 = vsel %vm460, %v454, 0
        %v471 = vsel %vm460, %v455, 0
        %v474 = vsel %vm460, %v456, 0
        %v477 = vsel %vm460, %v457, 0
        %v480 = vsel %vm460, %v458, 0
        %v483 = vsel %vm460, %v459, 0
        %vm485 = vcmask 1041408
        %v487 = vsel %vm485, %v435, 0
        %489 = vmatprep.subr.bf16.mxu0 0
        %490 = vmatpush1.bf16.msra.mxu0 0
        %491 = vmatprep.subr.bf16.mxu0 0
        %492 = vmatpush1.bf16.msra.mxu0 0
        %493 = vmatprep.subr.bf16.mxu0 0
        %494 = vmatpush1.bf16.msra.mxu0 0
        %495 = vmatprep.subr.bf16.mxu0 0
        %496 = vmatpush1.bf16.msra.mxu0 0
        %497 = vmatprep.subr.bf16.mxu0 0
        %498 = vmatpush1.bf16.msra.mxu0 0
        %499 = vmatprep.subr.bf16.mxu0 0
        %500 = vmatpush1.bf16.msra.mxu0 0
        %501 = vmatprep.subr.bf16.mxu0 0
        %502 = vmatpush1.bf16.msra.mxu0 0
        %503 = vmatprep.subr.bf16.mxu0 0
        %504 = vmatpush1.bf16.msra.mxu0 %v487
        %505 = vmatprep.subr.bf16.mxu0 0
        %506 = vmatpush2.bf16.msra.mxu0 0
        %507 = vmatprep.subr.bf16.mxu0 0
        %508 = vmatpush2.bf16.msra.mxu0 0
        %509 = vmatprep.subr.bf16.mxu0 0
        %510 = vmatpush2.bf16.msra.mxu0 0
        %511 = vmatprep.subr.bf16.mxu0 0
        %512 = vmatpush2.bf16.msra.mxu0 0
        %513 = vmatprep.subr.bf16.mxu0 0
        %514 = vmatpush2.bf16.msra.mxu0 0
        %515 = vmatprep.subr.bf16.mxu0 0
        %516 = vmatpush2.bf16.msra.mxu0 0
        %517 = vmatprep.subr.bf16.mxu0 0
        %518 = vmatpush2.bf16.msra.mxu0 0
        %519 = vmatprep.subr.bf16.mxu0 0
        %520 = vmatpush2.bf16.msra.mxu0 0
        %521 = vmatprep.mubr.bf16.mxu0 0
        %522 = vmatmul.mubr.bf16.gmra.mxu0 %v462
        %v523 = vpop.f32.mrf.mxu0
        %v524 = vadd.f32 0.0, %v523
        %v525 = vpop.f32.mrf.mxu0
        %v526 = vpop.f32.mrf.mxu0
        %v527 = vadd.f32 0.0, %v526
        %v528 = vpop.f32.mrf.mxu0
        %529 = vmatprep.mubr.bf16.mxu0 0
        %530 = vmatmul.mubr.bf16.gmra.mxu0 %v465
        %v531 = vpop.f32.mrf.mxu0
        %v532 = vadd.f32 0.0, %v531
        %v533 = vpop.f32.mrf.mxu0
        %v534 = vpop.f32.mrf.mxu0
        %v535 = vadd.f32 0.0, %v534
        %v536 = vpop.f32.mrf.mxu0
        %537 = vmatprep.mubr.bf16.mxu0 0
        %538 = vmatmul.mubr.bf16.gmra.mxu0 %v468
        %v539 = vpop.f32.mrf.mxu0
        %v540 = vadd.f32 0.0, %v539
        %v541 = vpop.f32.mrf.mxu0
        %v542 = vpop.f32.mrf.mxu0
        %v543 = vadd.f32 0.0, %v542
        %v544 = vpop.f32.mrf.mxu0
        %545 = vmatprep.mubr.bf16.mxu0 0
        %546 = vmatmul.mubr.bf16.gmra.mxu0 %v471
        %v547 = vpop.f32.mrf.mxu0
        %v548 = vadd.f32 0.0, %v547
        %v549 = vpop.f32.mrf.mxu0
        %v550 = vpop.f32.mrf.mxu0
        %v551 = vadd.f32 0.0, %v550
        %v552 = vpop.f32.mrf.mxu0
        %553 = vmatprep.mubr.bf16.mxu0 0
        %554 = vmatmul.mubr.bf16.gmra.mxu0 %v474
        %v555 = vpop.f32.mrf.mxu0
        %v556 = vadd.f32 0.0, %v555
        %v557 = vpop.f32.mrf.mxu0
        %v558 = vpop.f32.mrf.mxu0
        %v559 = vadd.f32 0.0, %v558
        %v560 = vpop.f32.mrf.mxu0
        %561 = vmatprep.mubr.bf16.mxu0 0
        %562 = vmatmul.mubr.bf16.gmra.mxu0 %v477
        %v563 = vpop.f32.mrf.mxu0
        %v564 = vadd.f32 0.0, %v563
        %v565 = vpop.f32.mrf.mxu0
        %v566 = vpop.f32.mrf.mxu0
        %v567 = vadd.f32 0.0, %v566
        %v568 = vpop.f32.mrf.mxu0
        %569 = vmatprep.mubr.bf16.mxu0 0
        %570 = vmatmul.mubr.bf16.gmra.mxu0 %v480
        %v571 = vpop.f32.mrf.mxu0
        %v572 = vadd.f32 0.0, %v571
        %v573 = vpop.f32.mrf.mxu0
        %v574 = vpop.f32.mrf.mxu0
        %v575 = vadd.f32 0.0, %v574
        %v576 = vpop.f32.mrf.mxu0
        %577 = vmatprep.mubr.bf16.mxu0 0
        %578 = vmatmul.mubr.bf16.gmra.mxu0 %v483
        %v579 = vpop.f32.mrf.mxu0
        %v580 = vadd.f32 0.0, %v579
        %v581 = vpop.f32.mrf.mxu0
        %v582 = vpop.f32.mrf.mxu0
        %v583 = vadd.f32 0.0, %v582
        %v584 = vpop.f32.mrf.mxu0
        %585 = vdwg.mxu0
        %v602 = vunpack.c.l.b16 %v214
        %v603 = vunpack.c.l.b16 %v215
        %v604 = vunpack.c.l.b16 %v216
        %v605 = vunpack.c.l.b16 %v217
        %v606 = vunpack.c.l.b16 %v218
        %v607 = vunpack.c.l.b16 %v219
        %v608 = vunpack.c.l.b16 %v220
        %v609 = vunpack.c.l.b16 %v221
        %v610 = vunpack.c.l.b16 %v222
        %v611 = vunpack.c.l.b16 %v223
        %v612 = vunpack.c.l.b16 %v224
        %v613 = vunpack.c.l.b16 %v225
        %v614 = vunpack.c.l.b16 %v226
        %v615 = vunpack.c.l.b16 %v227
        %v616 = vunpack.c.l.b16 %v228
        %v617 = vunpack.c.l.b16 %v229
        %v618 = vpack.c.b16 %v603, %v602
        %v619 = vpack.c.b16 %v605, %v604
        %v620 = vpack.c.b16 %v607, %v606
        %v621 = vpack.c.b16 %v609, %v608
        %v622 = vpack.c.b16 %v611, %v610
        %v623 = vpack.c.b16 %v613, %v612
        %v624 = vpack.c.b16 %v615, %v614
        %v625 = vpack.c.b16 %v617, %v616
        %v627 = vsel %vm460, %v618, 0
        %v630 = vsel %vm460, %v619, 0
        %v633 = vsel %vm460, %v620, 0
        %v636 = vsel %vm460, %v621, 0
        %v639 = vsel %vm460, %v622, 0
        %v642 = vsel %vm460, %v623, 0
        %v645 = vsel %vm460, %v624, 0
        %v648 = vsel %vm460, %v625, 0
        %v651 = vsel %vm485, %v230, 0
        %653 = vmatprep.subr.bf16.mxu0 0
        %654 = vmatpush1.bf16.msra.mxu0 0
        %655 = vmatprep.subr.bf16.mxu0 0
        %656 = vmatpush1.bf16.msra.mxu0 0
        %657 = vmatprep.subr.bf16.mxu0 0
        %658 = vmatpush1.bf16.msra.mxu0 0
        %659 = vmatprep.subr.bf16.mxu0 0
        %660 = vmatpush1.bf16.msra.mxu0 0
        %661 = vmatprep.subr.bf16.mxu0 0
        %662 = vmatpush1.bf16.msra.mxu0 0
        %663 = vmatprep.subr.bf16.mxu0 0
        %664 = vmatpush1.bf16.msra.mxu0 0
        %665 = vmatprep.subr.bf16.mxu0 0
        %666 = vmatpush1.bf16.msra.mxu0 0
        %667 = vmatprep.subr.bf16.mxu0 0
        %668 = vmatpush1.bf16.msra.mxu0 %v651
        %669 = vmatprep.subr.bf16.mxu0 0
        %670 = vmatpush2.bf16.msra.mxu0 0
        %671 = vmatprep.subr.bf16.mxu0 0
        %672 = vmatpush2.bf16.msra.mxu0 0
        %673 = vmatprep.subr.bf16.mxu0 0
        %674 = vmatpush2.bf16.msra.mxu0 0
        %675 = vmatprep.subr.bf16.mxu0 0
        %676 = vmatpush2.bf16.msra.mxu0 0
        %677 = vmatprep.subr.bf16.mxu0 0
        %678 = vmatpush2.bf16.msra.mxu0 0
        %679 = vmatprep.subr.bf16.mxu0 0
        %680 = vmatpush2.bf16.msra.mxu0 0
        %681 = vmatprep.subr.bf16.mxu0 0
        %682 = vmatpush2.bf16.msra.mxu0 0
        %683 = vmatprep.subr.bf16.mxu0 0
        %684 = vmatpush2.bf16.msra.mxu0 0
        %685 = vmatprep.mubr.bf16.mxu0 0
        %686 = vmatmul.mubr.bf16.gmra.mxu0 %v627
        %v687 = vpop.f32.mrf.mxu0
        %v688 = vadd.f32 %v524, %v687
        %v689 = vpop.f32.mrf.mxu0
        %v690 = vpop.f32.mrf.mxu0
        %v691 = vadd.f32 %v527, %v690
        %v692 = vpop.f32.mrf.mxu0
        %693 = vmatprep.mubr.bf16.mxu0 0
        %694 = vmatmul.mubr.bf16.gmra.mxu0 %v630
        %v695 = vpop.f32.mrf.mxu0
        %v696 = vadd.f32 %v532, %v695
        %v697 = vpop.f32.mrf.mxu0
        %v698 = vpop.f32.mrf.mxu0
        %v699 = vadd.f32 %v535, %v698
        %v700 = vpop.f32.mrf.mxu0
        %701 = vmatprep.mubr.bf16.mxu0 0
        %702 = vmatmul.mubr.bf16.gmra.mxu0 %v633
        %v703 = vpop.f32.mrf.mxu0
        %v704 = vadd.f32 %v540, %v703
        %v705 = vpop.f32.mrf.mxu0
        %v706 = vpop.f32.mrf.mxu0
        %v707 = vadd.f32 %v543, %v706
        %v708 = vpop.f32.mrf.mxu0
        %709 = vmatprep.mubr.bf16.mxu0 0
        %710 = vmatmul.mubr.bf16.gmra.mxu0 %v636
        %v711 = vpop.f32.mrf.mxu0
        %v712 = vadd.f32 %v548, %v711
        %v713 = vpop.f32.mrf.mxu0
        %v714 = vpop.f32.mrf.mxu0
        %v715 = vadd.f32 %v551, %v714
        %v716 = vpop.f32.mrf.mxu0
        %717 = vmatprep.mubr.bf16.mxu0 0
        %718 = vmatmul.mubr.bf16.gmra.mxu0 %v639
        %v719 = vpop.f32.mrf.mxu0
        %v720 = vadd.f32 %v556, %v719
        %v721 = vpop.f32.mrf.mxu0
        %v722 = vpop.f32.mrf.mxu0
        %v723 = vadd.f32 %v559, %v722
        %v724 = vpop.f32.mrf.mxu0
        %725 = vmatprep.mubr.bf16.mxu0 0
        %726 = vmatmul.mubr.bf16.gmra.mxu0 %v642
        %v727 = vpop.f32.mrf.mxu0
        %v728 = vadd.f32 %v564, %v727
        %v729 = vpop.f32.mrf.mxu0
        %v730 = vpop.f32.mrf.mxu0
        %v731 = vadd.f32 %v567, %v730
        %v732 = vpop.f32.mrf.mxu0
        %733 = vmatprep.mubr.bf16.mxu0 0
        %734 = vmatmul.mubr.bf16.gmra.mxu0 %v645
        %v735 = vpop.f32.mrf.mxu0
        %v736 = vadd.f32 %v572, %v735
        %v737 = vpop.f32.mrf.mxu0
        %v738 = vpop.f32.mrf.mxu0
        %v739 = vadd.f32 %v575, %v738
        %v740 = vpop.f32.mrf.mxu0
        %741 = vmatprep.mubr.bf16.mxu0 0
        %742 = vmatmul.mubr.bf16.gmra.mxu0 %v648
        %v743 = vpop.f32.mrf.mxu0
        %v744 = vadd.f32 %v580, %v743
        %v745 = vpop.f32.mrf.mxu0
        %v746 = vpop.f32.mrf.mxu0
        %v747 = vadd.f32 %v583, %v746
        %v748 = vpop.f32.mrf.mxu0
        %749 = vdwg.mxu0
        %v750 = vld [vmem:[%s213] sm:$0xe]
        %v751 = vld [vmem:[%s213 + $0xc] sm:$0xe]
        %v752 = vld [vmem:[%s213 + $0x18] sm:$0xe]
        %v753 = vld [vmem:[%s213 + $0x24] sm:$0xe]
        %v754 = vld [vmem:[%s213 + $0x30] sm:$0xe]
        %v755 = vld [vmem:[%s213 + $0x3c] sm:$0xe]
        %v756 = vld [vmem:[%s213 + $0x48] sm:$0xe]
        %v757 = vld [vmem:[%s213 + $0x54] sm:$0xe]
        %vm774 = vcmask 1042432
        %vm775 = vcmask 1046532
        %vm776 = vmor %vm774, %vm775
        %v777 = vrot.slane %v750, 5
        %v778 = vrot.slane %v777, 4
        %v779 = vrot.slane %v215, 5
        %v780 = vsel %vm776, %v778, %v779
        %v781 = vrot.slane %v779, 4
        %v782 = vrot.slane %v231, 5
        %v783 = vsel %vm776, %v781, %v782
        %v784 = vrot.slane %v751, 5
        %v785 = vrot.slane %v784, 4
        %v786 = vrot.slane %v217, 5
        %v787 = vsel %vm776, %v785, %v786
        %v788 = vrot.slane %v786, 4
        %v789 = vrot.slane %v232, 5
        %v790 = vsel %vm776, %v788, %v789
        %v791 = vrot.slane %v752, 5
        %v792 = vrot.slane %v791, 4
        %v793 = vrot.slane %v219, 5
        %v794 = vsel %vm776, %v792, %v793
        %v795 = vrot.slane %v793, 4
        %v796 = vrot.slane %v233, 5
        %v797 = vsel %vm776, %v795, %v796
        %v798 = vrot.slane %v753, 5
        %v799 = vrot.slane %v798, 4
        %v800 = vrot.slane %v221, 5
        %v801 = vsel %vm776, %v799, %v800
        %v802 = vrot.slane %v800, 4
        %v803 = vrot.slane %v234, 5
        %v804 = vsel %vm776, %v802, %v803
        %v805 = vrot.slane %v754, 5
        %v806 = vrot.slane %v805, 4
        %v807 = vrot.slane %v223, 5
        %v808 = vsel %vm776, %v806, %v807
        %v809 = vrot.slane %v807, 4
        %v810 = vrot.slane %v235, 5
        %v811 = vsel %vm776, %v809, %v810
        %v812 = vrot.slane %v755, 5
        %v813 = vrot.slane %v812, 4
        %v814 = vrot.slane %v225, 5
        %v815 = vsel %vm776, %v813, %v814
        %v816 = vrot.slane %v814, 4
        %v817 = vrot.slane %v236, 5
        %v818 = vsel %vm776, %v816, %v817
        %v819 = vrot.slane %v756, 5
        %v820 = vrot.slane %v819, 4
        %v821 = vrot.slane %v227, 5
        %v822 = vsel %vm776, %v820, %v821
        %v823 = vrot.slane %v821, 4
        %v824 = vrot.slane %v237, 5
        %v825 = vsel %vm776, %v823, %v824
        %v826 = vrot.slane %v757, 5
        %v827 = vrot.slane %v826, 4
        %v828 = vrot.slane %v229, 5
        %v829 = vsel %vm776, %v827, %v828
        %v830 = vrot.slane %v828, 4
        %v831 = vrot.slane %v238, 5
        %v832 = vsel %vm776, %v830, %v831
        %s833 = scalar_lea.vmem %s1, 4
        %v834 = vld [vmem:[%s833] sm:$0x3]
        %v835 = vunpack.c.l.b16 %v780
        %v836 = vunpack.c.l.b16 %v783
        %v837 = vunpack.c.l.b16 %v787
        %v838 = vunpack.c.l.b16 %v790
        %v839 = vunpack.c.l.b16 %v794
        %v840 = vunpack.c.l.b16 %v797
        %v841 = vunpack.c.l.b16 %v801
        %v842 = vunpack.c.l.b16 %v804
        %v843 = vunpack.c.l.b16 %v808
        %v844 = vunpack.c.l.b16 %v811
        %v845 = vunpack.c.l.b16 %v815
        %v846 = vunpack.c.l.b16 %v818
        %v847 = vunpack.c.l.b16 %v822
        %v848 = vunpack.c.l.b16 %v825
        %v849 = vunpack.c.l.b16 %v829
        %v850 = vunpack.c.l.b16 %v832
        %v851 = vpack.c.b16 %v836, %v835
        %v852 = vpack.c.b16 %v838, %v837
        %v853 = vpack.c.b16 %v840, %v839
        %v854 = vpack.c.b16 %v842, %v841
        %v855 = vpack.c.b16 %v844, %v843
        %v856 = vpack.c.b16 %v846, %v845
        %v857 = vpack.c.b16 %v848, %v847
        %v858 = vpack.c.b16 %v850, %v849
        %v860 = vsel %vm460, %v851, 0
        %v863 = vsel %vm460, %v852, 0
        %v866 = vsel %vm460, %v853, 0
        %v869 = vsel %vm460, %v854, 0
        %v872 = vsel %vm460, %v855, 0
        %v875 = vsel %vm460, %v856, 0
        %v878 = vsel %vm460, %v857, 0
        %v881 = vsel %vm460, %v858, 0
        %v884 = vsel %vm485, %v834, 0
        %886 = vmatprep.subr.bf16.mxu0 0
        %887 = vmatpush1.bf16.msra.mxu0 0
        %888 = vmatprep.subr.bf16.mxu0 0
        %889 = vmatpush1.bf16.msra.mxu0 0
        %890 = vmatprep.subr.bf16.mxu0 0
        %891 = vmatpush1.bf16.msra.mxu0 0
        %892 = vmatprep.subr.bf16.mxu0 0
        %893 = vmatpush1.bf16.msra.mxu0 0
        %894 = vmatprep.subr.bf16.mxu0 0
        %895 = vmatpush1.bf16.msra.mxu0 0
        %896 = vmatprep.subr.bf16.mxu0 0
        %897 = vmatpush1.bf16.msra.mxu0 0
        %898 = vmatprep.subr.bf16.mxu0 0
        %899 = vmatpush1.bf16.msra.mxu0 0
        %900 = vmatprep.subr.bf16.mxu0 0
        %901 = vmatpush1.bf16.msra.mxu0 %v884
        %902 = vmatprep.subr.bf16.mxu0 0
        %903 = vmatpush2.bf16.msra.mxu0 0
        %904 = vmatprep.subr.bf16.mxu0 0
        %905 = vmatpush2.bf16.msra.mxu0 0
        %906 = vmatprep.subr.bf16.mxu0 0
        %907 = vmatpush2.bf16.msra.mxu0 0
        %908 = vmatprep.subr.bf16.mxu0 0
        %909 = vmatpush2.bf16.msra.mxu0 0
        %910 = vmatprep.subr.bf16.mxu0 0
        %911 = vmatpush2.bf16.msra.mxu0 0
        %912 = vmatprep.subr.bf16.mxu0 0
        %913 = vmatpush2.bf16.msra.mxu0 0
        %914 = vmatprep.subr.bf16.mxu0 0
        %915 = vmatpush2.bf16.msra.mxu0 0
        %916 = vmatprep.subr.bf16.mxu0 0
        %917 = vmatpush2.bf16.msra.mxu0 0
        %918 = vmatprep.mubr.bf16.mxu0 0
        %919 = vmatmul.mubr.bf16.gmra.mxu0 %v860
        %v920 = vpop.f32.mrf.mxu0
        %v921 = vadd.f32 0.0, %v920
        %v922 = vpop.f32.mrf.mxu0
        %v923 = vpop.f32.mrf.mxu0
        %v924 = vadd.f32 0.0, %v923
        %v925 = vpop.f32.mrf.mxu0
        %926 = vmatprep.mubr.bf16.mxu0 0
        %927 = vmatmul.mubr.bf16.gmra.mxu0 %v863
        %v928 = vpop.f32.mrf.mxu0
        %v929 = vadd.f32 0.0, %v928
        %v930 = vpop.f32.mrf.mxu0
        %v931 = vpop.f32.mrf.mxu0
        %v932 = vadd.f32 0.0, %v931
        %v933 = vpop.f32.mrf.mxu0
        %934 = vmatprep.mubr.bf16.mxu0 0
        %935 = vmatmul.mubr.bf16.gmra.mxu0 %v866
        %v936 = vpop.f32.mrf.mxu0
        %v937 = vadd.f32 0.0, %v936
        %v938 = vpop.f32.mrf.mxu0
        %v939 = vpop.f32.mrf.mxu0
        %v940 = vadd.f32 0.0, %v939
        %v941 = vpop.f32.mrf.mxu0
        %942 = vmatprep.mubr.bf16.mxu0 0
        %943 = vmatmul.mubr.bf16.gmra.mxu0 %v869
        %v944 = vpop.f32.mrf.mxu0
        %v945 = vadd.f32 0.0, %v944
        %v946 = vpop.f32.mrf.mxu0
        %v947 = vpop.f32.mrf.mxu0
        %v948 = vadd.f32 0.0, %v947
        %v949 = vpop.f32.mrf.mxu0
        %950 = vmatprep.mubr.bf16.mxu0 0
        %951 = vmatmul.mubr.bf16.gmra.mxu0 %v872
        %v952 = vpop.f32.mrf.mxu0
        %v953 = vadd.f32 0.0, %v952
        %v954 = vpop.f32.mrf.mxu0
        %v955 = vpop.f32.mrf.mxu0
        %v956 = vadd.f32 0.0, %v955
        %v957 = vpop.f32.mrf.mxu0
        %958 = vmatprep.mubr.bf16.mxu0 0
        %959 = vmatmul.mubr.bf16.gmra.mxu0 %v875
        %v960 = vpop.f32.mrf.mxu0
        %v961 = vadd.f32 0.0, %v960
        %v962 = vpop.f32.mrf.mxu0
        %v963 = vpop.f32.mrf.mxu0
        %v964 = vadd.f32 0.0, %v963
        %v965 = vpop.f32.mrf.mxu0
        %966 = vmatprep.mubr.bf16.mxu0 0
        %967 = vmatmul.mubr.bf16.gmra.mxu0 %v878
        %v968 = vpop.f32.mrf.mxu0
        %v969 = vadd.f32 0.0, %v968
        %v970 = vpop.f32.mrf.mxu0
        %v971 = vpop.f32.mrf.mxu0
        %v972 = vadd.f32 0.0, %v971
        %v973 = vpop.f32.mrf.mxu0
        %974 = vmatprep.mubr.bf16.mxu0 0
        %975 = vmatmul.mubr.bf16.gmra.mxu0 %v881
        %v976 = vpop.f32.mrf.mxu0
        %v977 = vadd.f32 0.0, %v976
        %v978 = vpop.f32.mrf.mxu0
        %v979 = vpop.f32.mrf.mxu0
        %v980 = vadd.f32 0.0, %v979
        %v981 = vpop.f32.mrf.mxu0
        %982 = vdwg.mxu0
        %v983 = vadd.f32 %v688, %v921
        %v984 = vadd.f32 %v691, %v924
        %v985 = vadd.f32 %v696, %v929
        %v986 = vadd.f32 %v699, %v932
        %v987 = vadd.f32 %v704, %v937
        %v988 = vadd.f32 %v707, %v940
        %v989 = vadd.f32 %v712, %v945
        %v990 = vadd.f32 %v715, %v948
        %v991 = vadd.f32 %v720, %v953
        %v992 = vadd.f32 %v723, %v956
        %v993 = vadd.f32 %v728, %v961
        %v994 = vadd.f32 %v731, %v964
        %v995 = vadd.f32 %v736, %v969
        %v996 = vadd.f32 %v739, %v972
        %v997 = vadd.f32 %v744, %v977
        %v998 = vadd.f32 %v747, %v980
        %s999 = sadd.s32 %s210, 1
        %s1000 = smul.u32 %s999, 3
        %s1001 = smul.addr %s1000, 4
        %s1002 = scalar_lea.vmem %s197, %s1001
        %v1003 = vld [vmem:[%s1002] sm:$0xf]
        %v1004 = vld [vmem:[%s1002 + $0x4] sm:$0xf]
        %v1005 = vld [vmem:[%s1002 + $0xc] sm:$0xf]
        %v1006 = vld [vmem:[%s1002 + $0x10] sm:$0xf]
        %v1007 = vld [vmem:[%s1002 + $0x18] sm:$0xf]
        %v1008 = vld [vmem:[%s1002 + $0x1c] sm:$0xf]
        %v1009 = vld [vmem:[%s1002 + $0x24] sm:$0xf]
        %v1010 = vld [vmem:[%s1002 + $0x28] sm:$0xf]
        %v1011 = vld [vmem:[%s1002 + $0x30] sm:$0xf]
        %v1012 = vld [vmem:[%s1002 + $0x34] sm:$0xf]
        %v1013 = vld [vmem:[%s1002 + $0x3c] sm:$0xf]
        %v1014 = vld [vmem:[%s1002 + $0x40] sm:$0xf]
        %v1015 = vld [vmem:[%s1002 + $0x48] sm:$0xf]
        %v1016 = vld [vmem:[%s1002 + $0x4c] sm:$0xf]
        %v1017 = vld [vmem:[%s1002 + $0x54] sm:$0xf]
        %v1018 = vld [vmem:[%s1002 + $0x58] sm:$0xf]
        %s1019 = scalar_lea.vmem %s1, 6
        %v1020 = vld [vmem:[%s1019] sm:$0x3]
        %v1037 = vunpack.c.l.b16 %v1003
        %v1038 = vunpack.c.l.b16 %v1004
        %v1039 = vunpack.c.l.b16 %v1005
        %v1040 = vunpack.c.l.b16 %v1006
        %v1041 = vunpack.c.l.b16 %v1007
        %v1042 = vunpack.c.l.b16 %v1008
        %v1043 = vunpack.c.l.b16 %v1009
        %v1044 = vunpack.c.l.b16 %v1010
        %v1045 = vunpack.c.l.b16 %v1011
        %v1046 = vunpack.c.l.b16 %v1012
        %v1047 = vunpack.c.l.b16 %v1013
        %v1048 = vunpack.c.l.b16 %v1014
        %v1049 = vunpack.c.l.b16 %v1015
        %v1050 = vunpack.c.l.b16 %v1016
        %v1051 = vunpack.c.l.b16 %v1017
        %v1052 = vunpack.c.l.b16 %v1018
        %v1053 = vpack.c.b16 %v1038, %v1037
        %v1054 = vpack.c.b16 %v1040, %v1039
        %v1055 = vpack.c.b16 %v1042, %v1041
        %v1056 = vpack.c.b16 %v1044, %v1043
        %v1057 = vpack.c.b16 %v1046, %v1045
        %v1058 = vpack.c.b16 %v1048, %v1047
        %v1059 = vpack.c.b16 %v1050, %v1049
        %v1060 = vpack.c.b16 %v1052, %v1051
        %v1062 = vsel %vm460, %v1053, 0
        %v1065 = vsel %vm460, %v1054, 0
        %v1068 = vsel %vm460, %v1055, 0
        %v1071 = vsel %vm460, %v1056, 0
        %v1074 = vsel %vm460, %v1057, 0
        %v1077 = vsel %vm460, %v1058, 0
        %v1080 = vsel %vm460, %v1059, 0
        %v1083 = vsel %vm460, %v1060, 0
        %v1086 = vsel %vm485, %v1020, 0
        %1088 = vmatprep.subr.bf16.mxu0 0
        %1089 = vmatpush1.bf16.msra.mxu0 0
        %1090 = vmatprep.subr.bf16.mxu0 0
        %1091 = vmatpush1.bf16.msra.mxu0 0
        %1092 = vmatprep.subr.bf16.mxu0 0
        %1093 = vmatpush1.bf16.msra.mxu0 0
        %1094 = vmatprep.subr.bf16.mxu0 0
        %1095 = vmatpush1.bf16.msra.mxu0 0
        %1096 = vmatprep.subr.bf16.mxu0 0
        %1097 = vmatpush1.bf16.msra.mxu0 0
        %1098 = vmatprep.subr.bf16.mxu0 0
        %1099 = vmatpush1.bf16.msra.mxu0 0
        %1100 = vmatprep.subr.bf16.mxu0 0
        %1101 = vmatpush1.bf16.msra.mxu0 0
        %1102 = vmatprep.subr.bf16.mxu0 0
        %1103 = vmatpush1.bf16.msra.mxu0 %v1086
        %1104 = vmatprep.subr.bf16.mxu0 0
        %1105 = vmatpush2.bf16.msra.mxu0 0
        %1106 = vmatprep.subr.bf16.mxu0 0
        %1107 = vmatpush2.bf16.msra.mxu0 0
        %1108 = vmatprep.subr.bf16.mxu0 0
        %1109 = vmatpush2.bf16.msra.mxu0 0
        %1110 = vmatprep.subr.bf16.mxu0 0
        %1111 = vmatpush2.bf16.msra.mxu0 0
        %1112 = vmatprep.subr.bf16.mxu0 0
        %1113 = vmatpush2.bf16.msra.mxu0 0
        %1114 = vmatprep.subr.bf16.mxu0 0
        %1115 = vmatpush2.bf16.msra.mxu0 0
        %1116 = vmatprep.subr.bf16.mxu0 0
        %1117 = vmatpush2.bf16.msra.mxu0 0
        %1118 = vmatprep.subr.bf16.mxu0 0
        %1119 = vmatpush2.bf16.msra.mxu0 0
        %1120 = vmatprep.mubr.bf16.mxu0 0
        %1121 = vmatmul.mubr.bf16.gmra.mxu0 %v1062
        %v1122 = vpop.f32.mrf.mxu0
        %v1123 = vadd.f32 0.0, %v1122
        %v1124 = vpop.f32.mrf.mxu0
        %v1125 = vpop.f32.mrf.mxu0
        %v1126 = vadd.f32 0.0, %v1125
        %v1127 = vpop.f32.mrf.mxu0
        %1128 = vmatprep.mubr.bf16.mxu0 0
        %1129 = vmatmul.mubr.bf16.gmra.mxu0 %v1065
        %v1130 = vpop.f32.mrf.mxu0
        %v1131 = vadd.f32 0.0, %v1130
        %v1132 = vpop.f32.mrf.mxu0
        %v1133 = vpop.f32.mrf.mxu0
        %v1134 = vadd.f32 0.0, %v1133
        %v1135 = vpop.f32.mrf.mxu0
        %1136 = vmatprep.mubr.bf16.mxu0 0
        %1137 = vmatmul.mubr.bf16.gmra.mxu0 %v1068
        %v1138 = vpop.f32.mrf.mxu0
        %v1139 = vadd.f32 0.0, %v1138
        %v1140 = vpop.f32.mrf.mxu0
        %v1141 = vpop.f32.mrf.mxu0
        %v1142 = vadd.f32 0.0, %v1141
        %v1143 = vpop.f32.mrf.mxu0
        %1144 = vmatprep.mubr.bf16.mxu0 0
        %1145 = vmatmul.mubr.bf16.gmra.mxu0 %v1071
        %v1146 = vpop.f32.mrf.mxu0
        %v1147 = vadd.f32 0.0, %v1146
        %v1148 = vpop.f32.mrf.mxu0
        %v1149 = vpop.f32.mrf.mxu0
        %v1150 = vadd.f32 0.0, %v1149
        %v1151 = vpop.f32.mrf.mxu0
        %1152 = vmatprep.mubr.bf16.mxu0 0
        %1153 = vmatmul.mubr.bf16.gmra.mxu0 %v1074
        %v1154 = vpop.f32.mrf.mxu0
        %v1155 = vadd.f32 0.0, %v1154
        %v1156 = vpop.f32.mrf.mxu0
        %v1157 = vpop.f32.mrf.mxu0
        %v1158 = vadd.f32 0.0, %v1157
        %v1159 = vpop.f32.mrf.mxu0
        %1160 = vmatprep.mubr.bf16.mxu0 0
        %1161 = vmatmul.mubr.bf16.gmra.mxu0 %v1077
        %v1162 = vpop.f32.mrf.mxu0
        %v1163 = vadd.f32 0.0, %v1162
        %v1164 = vpop.f32.mrf.mxu0
        %v1165 = vpop.f32.mrf.mxu0
        %v1166 = vadd.f32 0.0, %v1165
        %v1167 = vpop.f32.mrf.mxu0
        %1168 = vmatprep.mubr.bf16.mxu0 0
        %1169 = vmatmul.mubr.bf16.gmra.mxu0 %v1080
        %v1170 = vpop.f32.mrf.mxu0
        %v1171 = vadd.f32 0.0, %v1170
        %v1172 = vpop.f32.mrf.mxu0
        %v1173 = vpop.f32.mrf.mxu0
        %v1174 = vadd.f32 0.0, %v1173
        %v1175 = vpop.f32.mrf.mxu0
        %1176 = vmatprep.mubr.bf16.mxu0 0
        %1177 = vmatmul.mubr.bf16.gmra.mxu0 %v1083
        %v1178 = vpop.f32.mrf.mxu0
        %v1179 = vadd.f32 0.0, %v1178
        %v1180 = vpop.f32.mrf.mxu0
        %v1181 = vpop.f32.mrf.mxu0
        %v1182 = vadd.f32 0.0, %v1181
        %v1183 = vpop.f32.mrf.mxu0
        %1184 = vdwg.mxu0
        %v1185 = vadd.f32 %v983, %v1123
        %v1186 = vadd.f32 %v984, %v1126
        %v1187 = vadd.f32 %v985, %v1131
        %v1188 = vadd.f32 %v986, %v1134
        %v1189 = vadd.f32 %v987, %v1139
        %v1190 = vadd.f32 %v988, %v1142
        %v1191 = vadd.f32 %v989, %v1147
        %v1192 = vadd.f32 %v990, %v1150
        %v1193 = vadd.f32 %v991, %v1155
        %v1194 = vadd.f32 %v992, %v1158
        %v1195 = vadd.f32 %v993, %v1163
        %v1196 = vadd.f32 %v994, %v1166
        %v1197 = vadd.f32 %v995, %v1171
        %v1198 = vadd.f32 %v996, %v1174
        %v1199 = vadd.f32 %v997, %v1179
        %v1200 = vadd.f32 %v998, %v1182
        %v1201 = vld [vmem:[%s1002] sm:$0xf]
        %v1202 = vld [vmem:[%s1002 + $0x4] sm:$0xf]
        %v1203 = vld [vmem:[%s1002 + $0x8] sm:$0x1]
        %v1204 = vld [vmem:[%s1002 + $0xc] sm:$0xf]
        %v1205 = vld [vmem:[%s1002 + $0x10] sm:$0xf]
        %v1206 = vld [vmem:[%s1002 + $0x14] sm:$0x1]
        %v1207 = vld [vmem:[%s1002 + $0x18] sm:$0xf]
        %v1208 = vld [vmem:[%s1002 + $0x1c] sm:$0xf]
        %v1209 = vld [vmem:[%s1002 + $0x20] sm:$0x1]
        %v1210 = vld [vmem:[%s1002 + $0x24] sm:$0xf]
        %v1211 = vld [vmem:[%s1002 + $0x28] sm:$0xf]
        %v1212 = vld [vmem:[%s1002 + $0x2c] sm:$0x1]
        %v1213 = vld [vmem:[%s1002 + $0x30] sm:$0xf]
        %v1214 = vld [vmem:[%s1002 + $0x34] sm:$0xf]
        %v1215 = vld [vmem:[%s1002 + $0x38] sm:$0x1]
        %v1216 = vld [vmem:[%s1002 + $0x3c] sm:$0xf]
        %v1217 = vld [vmem:[%s1002 + $0x40] sm:$0xf]
        %v1218 = vld [vmem:[%s1002 + $0x44] sm:$0x1]
        %v1219 = vld [vmem:[%s1002 + $0x48] sm:$0xf]
        %v1220 = vld [vmem:[%s1002 + $0x4c] sm:$0xf]
        %v1221 = vld [vmem:[%s1002 + $0x50] sm:$0x1]
        %v1222 = vld [vmem:[%s1002 + $0x54] sm:$0xf]
        %v1223 = vld [vmem:[%s1002 + $0x58] sm:$0xf]
        %v1224 = vld [vmem:[%s1002 + $0x5c] sm:$0x1]
        %v1226 = vshrl.u32 %v1201, 16
        %v1228 = vrot.slane %v1226, 4
        %v1229 = vshll.u32 %v1201, 16
        %v1231 = vrot.slane %v1229, 5
        %v1232 = vor.u32 %v1228, %v1231
        %v1233 = vrot.slane %v1232, 4
        %v1235 = vshll.u32 %v1202, 16
        %v1237 = vrot.slane %v1235, 5
        %v1238 = vsel %vm241, %v1233, %v1237
        %v1239 = vshrl.u32 %v1202, 16
        %v1241 = vrot.slane %v1239, 4
        %v1242 = vor.u32 %v1241, %v1237
        %v1243 = vrot.slane %v1242, 4
        %v1245 = vshll.u32 %v1203, 16
        %v1247 = vrot.slane %v1245, 5
        %v1248 = vsel %vm241, %v1243, %v1247
        %v1250 = vshrl.u32 %v1204, 16
        %v1252 = vrot.slane %v1250, 4
        %v1253 = vshll.u32 %v1204, 16
        %v1255 = vrot.slane %v1253, 5
        %v1256 = vor.u32 %v1252, %v1255
        %v1257 = vrot.slane %v1256, 4
        %v1259 = vshll.u32 %v1205, 16
        %v1261 = vrot.slane %v1259, 5
        %v1262 = vsel %vm241, %v1257, %v1261
        %v1263 = vshrl.u32 %v1205, 16
        %v1265 = vrot.slane %v1263, 4
        %v1266 = vor.u32 %v1265, %v1261
        %v1267 = vrot.slane %v1266, 4
        %v1269 = vshll.u32 %v1206, 16
        %v1271 = vrot.slane %v1269, 5
        %v1272 = vsel %vm241, %v1267, %v1271
        %v1274 = vshrl.u32 %v1207, 16
        %v1276 = vrot.slane %v1274, 4
        %v1277 = vshll.u32 %v1207, 16
        %v1279 = vrot.slane %v1277, 5
        %v1280 = vor.u32 %v1276, %v1279
        %v1281 = vrot.slane %v1280, 4
        %v1283 = vshll.u32 %v1208, 16
        %v1285 = vrot.slane %v1283, 5
        %v1286 = vsel %vm241, %v1281, %v1285
        %v1287 = vshrl.u32 %v1208, 16
        %v1289 = vrot.slane %v1287, 4
        %v1290 = vor.u32 %v1289, %v1285
        %v1291 = vrot.slane %v1290, 4
        %v1293 = vshll.u32 %v1209, 16
        %v1295 = vrot.slane %v1293, 5
        %v1296 = vsel %vm241, %v1291, %v1295
        %v1298 = vshrl.u32 %v1210, 16
        %v1300 = vrot.slane %v1298, 4
        %v1301 = vshll.u32 %v1210, 16
        %v1303 = vrot.slane %v1301, 5
        %v1304 = vor.u32 %v1300, %v1303
        %v1305 = vrot.slane %v1304, 4
        %v1307 = vshll.u32 %v1211, 16
        %v1309 = vrot.slane %v1307, 5
        %v1310 = vsel %vm241, %v1305, %v1309
        %v1311 = vshrl.u32 %v1211, 16
        %v1313 = vrot.slane %v1311, 4
        %v1314 = vor.u32 %v1313, %v1309
        %v1315 = vrot.slane %v1314, 4
        %v1317 = vshll.u32 %v1212, 16
        %v1319 = vrot.slane %v1317, 5
        %v1320 = vsel %vm241, %v1315, %v1319
        %v1322 = vshrl.u32 %v1213, 16
        %v1324 = vrot.slane %v1322, 4
        %v1325 = vshll.u32 %v1213, 16
        %v1327 = vrot.slane %v1325, 5
        %v1328 = vor.u32 %v1324, %v1327
        %v1329 = vrot.slane %v1328, 4
        %v1331 = vshll.u32 %v1214, 16
        %v1333 = vrot.slane %v1331, 5
        %v1334 = vsel %vm241, %v1329, %v1333
        %v1335 = vshrl.u32 %v1214, 16
        %v1337 = vrot.slane %v1335, 4
        %v1338 = vor.u32 %v1337, %v1333
        %v1339 = vrot.slane %v1338, 4
        %v1341 = vshll.u32 %v1215, 16
        %v1343 = vrot.slane %v1341, 5
        %v1344 = vsel %vm241, %v1339, %v1343
        %v1346 = vshrl.u32 %v1216, 16
        %v1348 = vrot.slane %v1346, 4
        %v1349 = vshll.u32 %v1216, 16
        %v1351 = vrot.slane %v1349, 5
        %v1352 = vor.u32 %v1348, %v1351
        %v1353 = vrot.slane %v1352, 4
        %v1355 = vshll.u32 %v1217, 16
        %v1357 = vrot.slane %v1355, 5
        %v1358 = vsel %vm241, %v1353, %v1357
        %v1359 = vshrl.u32 %v1217, 16
        %v1361 = vrot.slane %v1359, 4
        %v1362 = vor.u32 %v1361, %v1357
        %v1363 = vrot.slane %v1362, 4
        %v1365 = vshll.u32 %v1218, 16
        %v1367 = vrot.slane %v1365, 5
        %v1368 = vsel %vm241, %v1363, %v1367
        %v1370 = vshrl.u32 %v1219, 16
        %v1372 = vrot.slane %v1370, 4
        %v1373 = vshll.u32 %v1219, 16
        %v1375 = vrot.slane %v1373, 5
        %v1376 = vor.u32 %v1372, %v1375
        %v1377 = vrot.slane %v1376, 4
        %v1379 = vshll.u32 %v1220, 16
        %v1381 = vrot.slane %v1379, 5
        %v1382 = vsel %vm241, %v1377, %v1381
        %v1383 = vshrl.u32 %v1220, 16
        %v1385 = vrot.slane %v1383, 4
        %v1386 = vor.u32 %v1385, %v1381
        %v1387 = vrot.slane %v1386, 4
        %v1389 = vshll.u32 %v1221, 16
        %v1391 = vrot.slane %v1389, 5
        %v1392 = vsel %vm241, %v1387, %v1391
        %v1394 = vshrl.u32 %v1222, 16
        %v1396 = vrot.slane %v1394, 4
        %v1397 = vshll.u32 %v1222, 16
        %v1399 = vrot.slane %v1397, 5
        %v1400 = vor.u32 %v1396, %v1399
        %v1401 = vrot.slane %v1400, 4
        %v1403 = vshll.u32 %v1223, 16
        %v1405 = vrot.slane %v1403, 5
        %v1406 = vsel %vm241, %v1401, %v1405
        %v1407 = vshrl.u32 %v1223, 16
        %v1409 = vrot.slane %v1407, 4
        %v1410 = vor.u32 %v1409, %v1405
        %v1411 = vrot.slane %v1410, 4
        %v1413 = vshll.u32 %v1224, 16
        %v1415 = vrot.slane %v1413, 5
        %v1416 = vsel %vm241, %v1411, %v1415
        %s1417 = scalar_lea.vmem %s1, 8
        %v1418 = vld [vmem:[%s1417] sm:$0x3]
        %v1419 = vunpack.c.l.b16 %v1238
        %v1420 = vunpack.c.l.b16 %v1248
        %v1421 = vunpack.c.l.b16 %v1262
        %v1422 = vunpack.c.l.b16 %v1272
        %v1423 = vunpack.c.l.b16 %v1286
        %v1424 = vunpack.c.l.b16 %v1296
        %v1425 = vunpack.c.l.b16 %v1310
        %v1426 = vunpack.c.l.b16 %v1320
        %v1427 = vunpack.c.l.b16 %v1334
        %v1428 = vunpack.c.l.b16 %v1344
        %v1429 = vunpack.c.l.b16 %v1358
        %v1430 = vunpack.c.l.b16 %v1368
        %v1431 = vunpack.c.l.b16 %v1382
        %v1432 = vunpack.c.l.b16 %v1392
        %v1433 = vunpack.c.l.b16 %v1406
        %v1434 = vunpack.c.l.b16 %v1416
        %v1435 = vpack.c.b16 %v1420, %v1419
        %v1436 = vpack.c.b16 %v1422, %v1421
        %v1437 = vpack.c.b16 %v1424, %v1423
        %v1438 = vpack.c.b16 %v1426, %v1425
        %v1439 = vpack.c.b16 %v1428, %v1427
        %v1440 = vpack.c.b16 %v1430, %v1429
        %v1441 = vpack.c.b16 %v1432, %v1431
        %v1442 = vpack.c.b16 %v1434, %v1433
        %v1444 = vsel %vm460, %v1435, 0
        %v1447 = vsel %vm460, %v1436, 0
        %v1450 = vsel %vm460, %v1437, 0
        %v1453 = vsel %vm460, %v1438, 0
        %v1456 = vsel %vm460, %v1439, 0
        %v1459 = vsel %vm460, %v1440, 0
        %v1462 = vsel %vm460, %v1441, 0
        %v1465 = vsel %vm460, %v1442, 0
        %v1468 = vsel %vm485, %v1418, 0
        %1470 = vmatprep.subr.bf16.mxu0 0
        %1471 = vmatpush1.bf16.msra.mxu0 0
        %1472 = vmatprep.subr.bf16.mxu0 0
        %1473 = vmatpush1.bf16.msra.mxu0 0
        %1474 = vmatprep.subr.bf16.mxu0 0
        %1475 = vmatpush1.bf16.msra.mxu0 0
        %1476 = vmatprep.subr.bf16.mxu0 0
        %1477 = vmatpush1.bf16.msra.mxu0 0
        %1478 = vmatprep.subr.bf16.mxu0 0
        %1479 = vmatpush1.bf16.msra.mxu0 0
        %1480 = vmatprep.subr.bf16.mxu0 0
        %1481 = vmatpush1.bf16.msra.mxu0 0
        %1482 = vmatprep.subr.bf16.mxu0 0
        %1483 = vmatpush1.bf16.msra.mxu0 0
        %1484 = vmatprep.subr.bf16.mxu0 0
        %1485 = vmatpush1.bf16.msra.mxu0 %v1468
        %1486 = vmatprep.subr.bf16.mxu0 0
        %1487 = vmatpush2.bf16.msra.mxu0 0
        %1488 = vmatprep.subr.bf16.mxu0 0
        %1489 = vmatpush2.bf16.msra.mxu0 0
        %1490 = vmatprep.subr.bf16.mxu0 0
        %1491 = vmatpush2.bf16.msra.mxu0 0
        %1492 = vmatprep.subr.bf16.mxu0 0
        %1493 = vmatpush2.bf16.msra.mxu0 0
        %1494 = vmatprep.subr.bf16.mxu0 0
        %1495 = vmatpush2.bf16.msra.mxu0 0
        %1496 = vmatprep.subr.bf16.mxu0 0
        %1497 = vmatpush2.bf16.msra.mxu0 0
        %1498 = vmatprep.subr.bf16.mxu0 0
        %1499 = vmatpush2.bf16.msra.mxu0 0
        %1500 = vmatprep.subr.bf16.mxu0 0
        %1501 = vmatpush2.bf16.msra.mxu0 0
        %1502 = vmatprep.mubr.bf16.mxu0 0
        %1503 = vmatmul.mubr.bf16.gmra.mxu0 %v1444
        %v1504 = vpop.f32.mrf.mxu0
        %v1505 = vadd.f32 0.0, %v1504
        %v1506 = vpop.f32.mrf.mxu0
        %v1507 = vpop.f32.mrf.mxu0
        %v1508 = vadd.f32 0.0, %v1507
        %v1509 = vpop.f32.mrf.mxu0
        %1510 = vmatprep.mubr.bf16.mxu0 0
        %1511 = vmatmul.mubr.bf16.gmra.mxu0 %v1447
        %v1512 = vpop.f32.mrf.mxu0
        %v1513 = vadd.f32 0.0, %v1512
        %v1514 = vpop.f32.mrf.mxu0
        %v1515 = vpop.f32.mrf.mxu0
        %v1516 = vadd.f32 0.0, %v1515
        %v1517 = vpop.f32.mrf.mxu0
        %1518 = vmatprep.mubr.bf16.mxu0 0
        %1519 = vmatmul.mubr.bf16.gmra.mxu0 %v1450
        %v1520 = vpop.f32.mrf.mxu0
        %v1521 = vadd.f32 0.0, %v1520
        %v1522 = vpop.f32.mrf.mxu0
        %v1523 = vpop.f32.mrf.mxu0
        %v1524 = vadd.f32 0.0, %v1523
        %v1525 = vpop.f32.mrf.mxu0
        %1526 = vmatprep.mubr.bf16.mxu0 0
        %1527 = vmatmul.mubr.bf16.gmra.mxu0 %v1453
        %v1528 = vpop.f32.mrf.mxu0
        %v1529 = vadd.f32 0.0, %v1528
        %v1530 = vpop.f32.mrf.mxu0
        %v1531 = vpop.f32.mrf.mxu0
        %v1532 = vadd.f32 0.0, %v1531
        %v1533 = vpop.f32.mrf.mxu0
        %1534 = vmatprep.mubr.bf16.mxu0 0
        %1535 = vmatmul.mubr.bf16.gmra.mxu0 %v1456
        %v1536 = vpop.f32.mrf.mxu0
        %v1537 = vadd.f32 0.0, %v1536
        %v1538 = vpop.f32.mrf.mxu0
        %v1539 = vpop.f32.mrf.mxu0
        %v1540 = vadd.f32 0.0, %v1539
        %v1541 = vpop.f32.mrf.mxu0
        %1542 = vmatprep.mubr.bf16.mxu0 0
        %1543 = vmatmul.mubr.bf16.gmra.mxu0 %v1459
        %v1544 = vpop.f32.mrf.mxu0
        %v1545 = vadd.f32 0.0, %v1544
        %v1546 = vpop.f32.mrf.mxu0
        %v1547 = vpop.f32.mrf.mxu0
        %v1548 = vadd.f32 0.0, %v1547
        %v1549 = vpop.f32.mrf.mxu0
        %1550 = vmatprep.mubr.bf16.mxu0 0
        %1551 = vmatmul.mubr.bf16.gmra.mxu0 %v1462
        %v1552 = vpop.f32.mrf.mxu0
        %v1553 = vadd.f32 0.0, %v1552
        %v1554 = vpop.f32.mrf.mxu0
        %v1555 = vpop.f32.mrf.mxu0
        %v1556 = vadd.f32 0.0, %v1555
        %v1557 = vpop.f32.mrf.mxu0
        %1558 = vmatprep.mubr.bf16.mxu0 0
        %1559 = vmatmul.mubr.bf16.gmra.mxu0 %v1465
        %v1560 = vpop.f32.mrf.mxu0
        %v1561 = vadd.f32 0.0, %v1560
        %v1562 = vpop.f32.mrf.mxu0
        %v1563 = vpop.f32.mrf.mxu0
        %v1564 = vadd.f32 0.0, %v1563
        %v1565 = vpop.f32.mrf.mxu0
        %1566 = vdwg.mxu0
        %v1567 = vadd.f32 %v1185, %v1505
        %v1568 = vadd.f32 %v1186, %v1508
        %v1569 = vadd.f32 %v1187, %v1513
        %v1570 = vadd.f32 %v1188, %v1516
        %v1571 = vadd.f32 %v1189, %v1521
        %v1572 = vadd.f32 %v1190, %v1524
        %v1573 = vadd.f32 %v1191, %v1529
        %v1574 = vadd.f32 %v1192, %v1532
        %v1575 = vadd.f32 %v1193, %v1537
        %v1576 = vadd.f32 %v1194, %v1540
        %v1577 = vadd.f32 %v1195, %v1545
        %v1578 = vadd.f32 %v1196, %v1548
        %v1579 = vadd.f32 %v1197, %v1553
        %v1580 = vadd.f32 %v1198, %v1556
        %v1581 = vadd.f32 %v1199, %v1561
        %v1582 = vadd.f32 %v1200, %v1564
        %v1583 = vld [vmem:[%s1002] sm:$0xe]
        %v1584 = vld [vmem:[%s1002 + $0xc] sm:$0xe]
        %v1585 = vld [vmem:[%s1002 + $0x18] sm:$0xe]
        %v1586 = vld [vmem:[%s1002 + $0x24] sm:$0xe]
        %v1587 = vld [vmem:[%s1002 + $0x30] sm:$0xe]
        %v1588 = vld [vmem:[%s1002 + $0x3c] sm:$0xe]
        %v1589 = vld [vmem:[%s1002 + $0x48] sm:$0xe]
        %v1590 = vld [vmem:[%s1002 + $0x54] sm:$0xe]
        %v1615 = vrot.slane %v1583, 5
        %v1616 = vrot.slane %v1615, 4
        %v1617 = vrot.slane %v1202, 5
        %v1618 = vsel %vm776, %v1616, %v1617
        %v1619 = vrot.slane %v1617, 4
        %v1620 = vrot.slane %v1203, 5
        %v1621 = vsel %vm776, %v1619, %v1620
        %v1622 = vrot.slane %v1584, 5
        %v1623 = vrot.slane %v1622, 4
        %v1624 = vrot.slane %v1205, 5
        %v1625 = vsel %vm776, %v1623, %v1624
        %v1626 = vrot.slane %v1624, 4
        %v1627 = vrot.slane %v1206, 5
        %v1628 = vsel %vm776, %v1626, %v1627
        %v1629 = vrot.slane %v1585, 5
        %v1630 = vrot.slane %v1629, 4
        %v1631 = vrot.slane %v1208, 5
        %v1632 = vsel %vm776, %v1630, %v1631
        %v1633 = vrot.slane %v1631, 4
        %v1634 = vrot.slane %v1209, 5
        %v1635 = vsel %vm776, %v1633, %v1634
        %v1636 = vrot.slane %v1586, 5
        %v1637 = vrot.slane %v1636, 4
        %v1638 = vrot.slane %v1211, 5
        %v1639 = vsel %vm776, %v1637, %v1638
        %v1640 = vrot.slane %v1638, 4
        %v1641 = vrot.slane %v1212, 5
        %v1642 = vsel %vm776, %v1640, %v1641
        %v1643 = vrot.slane %v1587, 5
        %v1644 = vrot.slane %v1643, 4
        %v1645 = vrot.slane %v1214, 5
        %v1646 = vsel %vm776, %v1644, %v1645
        %v1647 = vrot.slane %v1645, 4
        %v1648 = vrot.slane %v1215, 5
        %v1649 = vsel %vm776, %v1647, %v1648
        %v1650 = vrot.slane %v1588, 5
        %v1651 = vrot.slane %v1650, 4
        %v1652 = vrot.slane %v1217, 5
        %v1653 = vsel %vm776, %v1651, %v1652
        %v1654 = vrot.slane %v1652, 4
        %v1655 = vrot.slane %v1218, 5
        %v1656 = vsel %vm776, %v1654, %v1655
        %v1657 = vrot.slane %v1589, 5
        %v1658 = vrot.slane %v1657, 4
        %v1659 = vrot.slane %v1220, 5
        %v1660 = vsel %vm776, %v1658, %v1659
        %v1661 = vrot.slane %v1659, 4
        %v1662 = vrot.slane %v1221, 5
        %v1663 = vsel %vm776, %v1661, %v1662
        %v1664 = vrot.slane %v1590, 5
        %v1665 = vrot.slane %v1664, 4
        %v1666 = vrot.slane %v1223, 5
        %v1667 = vsel %vm776, %v1665, %v1666
        %v1668 = vrot.slane %v1666, 4
        %v1669 = vrot.slane %v1224, 5
        %v1670 = vsel %vm776, %v1668, %v1669
        %s1671 = scalar_lea.vmem %s1, 10
        %v1672 = vld [vmem:[%s1671] sm:$0x3]
        %v1673 = vunpack.c.l.b16 %v1618
        %v1674 = vunpack.c.l.b16 %v1621
        %v1675 = vunpack.c.l.b16 %v1625
        %v1676 = vunpack.c.l.b16 %v1628
        %v1677 = vunpack.c.l.b16 %v1632
        %v1678 = vunpack.c.l.b16 %v1635
        %v1679 = vunpack.c.l.b16 %v1639
        %v1680 = vunpack.c.l.b16 %v1642
        %v1681 = vunpack.c.l.b16 %v1646
        %v1682 = vunpack.c.l.b16 %v1649
        %v1683 = vunpack.c.l.b16 %v1653
        %v1684 = vunpack.c.l.b16 %v1656
        %v1685 = vunpack.c.l.b16 %v1660
        %v1686 = vunpack.c.l.b16 %v1663
        %v1687 = vunpack.c.l.b16 %v1667
        %v1688 = vunpack.c.l.b16 %v1670
        %v1689 = vpack.c.b16 %v1674, %v1673
        %v1690 = vpack.c.b16 %v1676, %v1675
        %v1691 = vpack.c.b16 %v1678, %v1677
        %v1692 = vpack.c.b16 %v1680, %v1679
        %v1693 = vpack.c.b16 %v1682, %v1681
        %v1694 = vpack.c.b16 %v1684, %v1683
        %v1695 = vpack.c.b16 %v1686, %v1685
        %v1696 = vpack.c.b16 %v1688, %v1687
        %v1698 = vsel %vm460, %v1689, 0
        %v1701 = vsel %vm460, %v1690, 0
        %v1704 = vsel %vm460, %v1691, 0
        %v1707 = vsel %vm460, %v1692, 0
        %v1710 = vsel %vm460, %v1693, 0
        %v1713 = vsel %vm460, %v1694, 0
        %v1716 = vsel %vm460, %v1695, 0
        %v1719 = vsel %vm460, %v1696, 0
        %v1722 = vsel %vm485, %v1672, 0
        %1724 = vmatprep.subr.bf16.mxu0 0
        %1725 = vmatpush1.bf16.msra.mxu0 0
        %1726 = vmatprep.subr.bf16.mxu0 0
        %1727 = vmatpush1.bf16.msra.mxu0 0
        %1728 = vmatprep.subr.bf16.mxu0 0
        %1729 = vmatpush1.bf16.msra.mxu0 0
        %1730 = vmatprep.subr.bf16.mxu0 0
        %1731 = vmatpush1.bf16.msra.mxu0 0
        %1732 = vmatprep.subr.bf16.mxu0 0
        %1733 = vmatpush1.bf16.msra.mxu0 0
        %1734 = vmatprep.subr.bf16.mxu0 0
        %1735 = vmatpush1.bf16.msra.mxu0 0
        %1736 = vmatprep.subr.bf16.mxu0 0
        %1737 = vmatpush1.bf16.msra.mxu0 0
        %1738 = vmatprep.subr.bf16.mxu0 0
        %1739 = vmatpush1.bf16.msra.mxu0 %v1722
        %1740 = vmatprep.subr.bf16.mxu0 0
        %1741 = vmatpush2.bf16.msra.mxu0 0
        %1742 = vmatprep.subr.bf16.mxu0 0
        %1743 = vmatpush2.bf16.msra.mxu0 0
        %1744 = vmatprep.subr.bf16.mxu0 0
        %1745 = vmatpush2.bf16.msra.mxu0 0
        %1746 = vmatprep.subr.bf16.mxu0 0
        %1747 = vmatpush2.bf16.msra.mxu0 0
        %1748 = vmatprep.subr.bf16.mxu0 0
        %1749 = vmatpush2.bf16.msra.mxu0 0
        %1750 = vmatprep.subr.bf16.mxu0 0
        %1751 = vmatpush2.bf16.msra.mxu0 0
        %1752 = vmatprep.subr.bf16.mxu0 0
        %1753 = vmatpush2.bf16.msra.mxu0 0
        %1754 = vmatprep.subr.bf16.mxu0 0
        %1755 = vmatpush2.bf16.msra.mxu0 0
        %1756 = vmatprep.mubr.bf16.mxu0 0
        %1757 = vmatmul.mubr.bf16.gmra.mxu0 %v1698
        %v1758 = vpop.f32.mrf.mxu0
        %v1759 = vadd.f32 0.0, %v1758
        %v1760 = vpop.f32.mrf.mxu0
        %v1761 = vpop.f32.mrf.mxu0
        %v1762 = vadd.f32 0.0, %v1761
        %v1763 = vpop.f32.mrf.mxu0
        %1764 = vmatprep.mubr.bf16.mxu0 0
        %1765 = vmatmul.mubr.bf16.gmra.mxu0 %v1701
        %v1766 = vpop.f32.mrf.mxu0
        %v1767 = vadd.f32 0.0, %v1766
        %v1768 = vpop.f32.mrf.mxu0
        %v1769 = vpop.f32.mrf.mxu0
        %v1770 = vadd.f32 0.0, %v1769
        %v1771 = vpop.f32.mrf.mxu0
        %1772 = vmatprep.mubr.bf16.mxu0 0
        %1773 = vmatmul.mubr.bf16.gmra.mxu0 %v1704
        %v1774 = vpop.f32.mrf.mxu0
        %v1775 = vadd.f32 0.0, %v1774
        %v1776 = vpop.f32.mrf.mxu0
        %v1777 = vpop.f32.mrf.mxu0
        %v1778 = vadd.f32 0.0, %v1777
        %v1779 = vpop.f32.mrf.mxu0
        %1780 = vmatprep.mubr.bf16.mxu0 0
        %1781 = vmatmul.mubr.bf16.gmra.mxu0 %v1707
        %v1782 = vpop.f32.mrf.mxu0
        %v1783 = vadd.f32 0.0, %v1782
        %v1784 = vpop.f32.mrf.mxu0
        %v1785 = vpop.f32.mrf.mxu0
        %v1786 = vadd.f32 0.0, %v1785
        %v1787 = vpop.f32.mrf.mxu0
        %1788 = vmatprep.mubr.bf16.mxu0 0
        %1789 = vmatmul.mubr.bf16.gmra.mxu0 %v1710
        %v1790 = vpop.f32.mrf.mxu0
        %v1791 = vadd.f32 0.0, %v1790
        %v1792 = vpop.f32.mrf.mxu0
        %v1793 = vpop.f32.mrf.mxu0
        %v1794 = vadd.f32 0.0, %v1793
        %v1795 = vpop.f32.mrf.mxu0
        %1796 = vmatprep.mubr.bf16.mxu0 0
        %1797 = vmatmul.mubr.bf16.gmra.mxu0 %v1713
        %v1798 = vpop.f32.mrf.mxu0
        %v1799 = vadd.f32 0.0, %v1798
        %v1800 = vpop.f32.mrf.mxu0
        %v1801 = vpop.f32.mrf.mxu0
        %v1802 = vadd.f32 0.0, %v1801
        %v1803 = vpop.f32.mrf.mxu0
        %1804 = vmatprep.mubr.bf16.mxu0 0
        %1805 = vmatmul.mubr.bf16.gmra.mxu0 %v1716
        %v1806 = vpop.f32.mrf.mxu0
        %v1807 = vadd.f32 0.0, %v1806
        %v1808 = vpop.f32.mrf.mxu0
        %v1809 = vpop.f32.mrf.mxu0
        %v1810 = vadd.f32 0.0, %v1809
        %v1811 = vpop.f32.mrf.mxu0
        %1812 = vmatprep.mubr.bf16.mxu0 0
        %1813 = vmatmul.mubr.bf16.gmra.mxu0 %v1719
        %v1814 = vpop.f32.mrf.mxu0
        %v1815 = vadd.f32 0.0, %v1814
        %v1816 = vpop.f32.mrf.mxu0
        %v1817 = vpop.f32.mrf.mxu0
        %v1818 = vadd.f32 0.0, %v1817
        %v1819 = vpop.f32.mrf.mxu0
        %1820 = vdwg.mxu0
        %v1821 = vadd.f32 %v1567, %v1759
        %v1822 = vadd.f32 %v1568, %v1762
        %v1823 = vadd.f32 %v1569, %v1767
        %v1824 = vadd.f32 %v1570, %v1770
        %v1825 = vadd.f32 %v1571, %v1775
        %v1826 = vadd.f32 %v1572, %v1778
        %v1827 = vadd.f32 %v1573, %v1783
        %v1828 = vadd.f32 %v1574, %v1786
        %v1829 = vadd.f32 %v1575, %v1791
        %v1830 = vadd.f32 %v1576, %v1794
        %v1831 = vadd.f32 %v1577, %v1799
        %v1832 = vadd.f32 %v1578, %v1802
        %v1833 = vadd.f32 %v1579, %v1807
        %v1834 = vadd.f32 %v1580, %v1810
        %v1835 = vadd.f32 %v1581, %v1815
        %v1836 = vadd.f32 %v1582, %v1818
        %s1837 = sadd.s32 %s210, 2
        %s1838 = smul.u32 %s1837, 3
        %s1839 = smul.addr %s1838, 4
        %s1840 = scalar_lea.vmem %s197, %s1839
        %v1841 = vld [vmem:[%s1840] sm:$0xf]
        %v1842 = vld [vmem:[%s1840 + $0x4] sm:$0xf]
        %v1843 = vld [vmem:[%s1840 + $0xc] sm:$0xf]
        %v1844 = vld [vmem:[%s1840 + $0x10] sm:$0xf]
        %v1845 = vld [vmem:[%s1840 + $0x18] sm:$0xf]
        %v1846 = vld [vmem:[%s1840 + $0x1c] sm:$0xf]
        %v1847 = vld [vmem:[%s1840 + $0x24] sm:$0xf]
        %v1848 = vld [vmem:[%s1840 + $0x28] sm:$0xf]
        %v1849 = vld [vmem:[%s1840 + $0x30] sm:$0xf]
        %v1850 = vld [vmem:[%s1840 + $0x34] sm:$0xf]
        %v1851 = vld [vmem:[%s1840 + $0x3c] sm:$0xf]
        %v1852 = vld [vmem:[%s1840 + $0x40] sm:$0xf]
        %v1853 = vld [vmem:[%s1840 + $0x48] sm:$0xf]
        %v1854 = vld [vmem:[%s1840 + $0x4c] sm:$0xf]
        %v1855 = vld [vmem:[%s1840 + $0x54] sm:$0xf]
        %v1856 = vld [vmem:[%s1840 + $0x58] sm:$0xf]
        %s1857 = scalar_lea.vmem %s1, 12
        %v1858 = vld [vmem:[%s1857] sm:$0x3]
        %v1875 = vunpack.c.l.b16 %v1841
        %v1876 = vunpack.c.l.b16 %v1842
        %v1877 = vunpack.c.l.b16 %v1843
        %v1878 = vunpack.c.l.b16 %v1844
        %v1879 = vunpack.c.l.b16 %v1845
        %v1880 = vunpack.c.l.b16 %v1846
        %v1881 = vunpack.c.l.b16 %v1847
        %v1882 = vunpack.c.l.b16 %v1848
        %v1883 = vunpack.c.l.b16 %v1849
        %v1884 = vunpack.c.l.b16 %v1850
        %v1885 = vunpack.c.l.b16 %v1851
        %v1886 = vunpack.c.l.b16 %v1852
        %v1887 = vunpack.c.l.b16 %v1853
        %v1888 = vunpack.c.l.b16 %v1854
        %v1889 = vunpack.c.l.b16 %v1855
        %v1890 = vunpack.c.l.b16 %v1856
        %v1891 = vpack.c.b16 %v1876, %v1875
        %v1892 = vpack.c.b16 %v1878, %v1877
        %v1893 = vpack.c.b16 %v1880, %v1879
        %v1894 = vpack.c.b16 %v1882, %v1881
        %v1895 = vpack.c.b16 %v1884, %v1883
        %v1896 = vpack.c.b16 %v1886, %v1885
        %v1897 = vpack.c.b16 %v1888, %v1887
        %v1898 = vpack.c.b16 %v1890, %v1889
        %v1900 = vsel %vm460, %v1891, 0
        %v1903 = vsel %vm460, %v1892, 0
        %v1906 = vsel %vm460, %v1893, 0
        %v1909 = vsel %vm460, %v1894, 0
        %v1912 = vsel %vm460, %v1895, 0
        %v1915 = vsel %vm460, %v1896, 0
        %v1918 = vsel %vm460, %v1897, 0
        %v1921 = vsel %vm460, %v1898, 0
        %v1924 = vsel %vm485, %v1858, 0
        %1926 = vmatprep.subr.bf16.mxu0 0
        %1927 = vmatpush1.bf16.msra.mxu0 0
        %1928 = vmatprep.subr.bf16.mxu0 0
        %1929 = vmatpush1.bf16.msra.mxu0 0
        %1930 = vmatprep.subr.bf16.mxu0 0
        %1931 = vmatpush1.bf16.msra.mxu0 0
        %1932 = vmatprep.subr.bf16.mxu0 0
        %1933 = vmatpush1.bf16.msra.mxu0 0
        %1934 = vmatprep.subr.bf16.mxu0 0
        %1935 = vmatpush1.bf16.msra.mxu0 0
        %1936 = vmatprep.subr.bf16.mxu0 0
        %1937 = vmatpush1.bf16.msra.mxu0 0
        %1938 = vmatprep.subr.bf16.mxu0 0
        %1939 = vmatpush1.bf16.msra.mxu0 0
        %1940 = vmatprep.subr.bf16.mxu0 0
        %1941 = vmatpush1.bf16.msra.mxu0 %v1924
        %1942 = vmatprep.subr.bf16.mxu0 0
        %1943 = vmatpush2.bf16.msra.mxu0 0
        %1944 = vmatprep.subr.bf16.mxu0 0
        %1945 = vmatpush2.bf16.msra.mxu0 0
        %1946 = vmatprep.subr.bf16.mxu0 0
        %1947 = vmatpush2.bf16.msra.mxu0 0
        %1948 = vmatprep.subr.bf16.mxu0 0
        %1949 = vmatpush2.bf16.msra.mxu0 0
        %1950 = vmatprep.subr.bf16.mxu0 0
        %1951 = vmatpush2.bf16.msra.mxu0 0
        %1952 = vmatprep.subr.bf16.mxu0 0
        %1953 = vmatpush2.bf16.msra.mxu0 0
        %1954 = vmatprep.subr.bf16.mxu0 0
        %1955 = vmatpush2.bf16.msra.mxu0 0
        %1956 = vmatprep.subr.bf16.mxu0 0
        %1957 = vmatpush2.bf16.msra.mxu0 0
        %1958 = vmatprep.mubr.bf16.mxu0 0
        %1959 = vmatmul.mubr.bf16.gmra.mxu0 %v1900
        %v1960 = vpop.f32.mrf.mxu0
        %v1961 = vadd.f32 0.0, %v1960
        %v1962 = vpop.f32.mrf.mxu0
        %v1963 = vpop.f32.mrf.mxu0
        %v1964 = vadd.f32 0.0, %v1963
        %v1965 = vpop.f32.mrf.mxu0
        %1966 = vmatprep.mubr.bf16.mxu0 0
        %1967 = vmatmul.mubr.bf16.gmra.mxu0 %v1903
        %v1968 = vpop.f32.mrf.mxu0
        %v1969 = vadd.f32 0.0, %v1968
        %v1970 = vpop.f32.mrf.mxu0
        %v1971 = vpop.f32.mrf.mxu0
        %v1972 = vadd.f32 0.0, %v1971
        %v1973 = vpop.f32.mrf.mxu0
        %1974 = vmatprep.mubr.bf16.mxu0 0
        %1975 = vmatmul.mubr.bf16.gmra.mxu0 %v1906
        %v1976 = vpop.f32.mrf.mxu0
        %v1977 = vadd.f32 0.0, %v1976
        %v1978 = vpop.f32.mrf.mxu0
        %v1979 = vpop.f32.mrf.mxu0
        %v1980 = vadd.f32 0.0, %v1979
        %v1981 = vpop.f32.mrf.mxu0
        %1982 = vmatprep.mubr.bf16.mxu0 0
        %1983 = vmatmul.mubr.bf16.gmra.mxu0 %v1909
        %v1984 = vpop.f32.mrf.mxu0
        %v1985 = vadd.f32 0.0, %v1984
        %v1986 = vpop.f32.mrf.mxu0
        %v1987 = vpop.f32.mrf.mxu0
        %v1988 = vadd.f32 0.0, %v1987
        %v1989 = vpop.f32.mrf.mxu0
        %1990 = vmatprep.mubr.bf16.mxu0 0
        %1991 = vmatmul.mubr.bf16.gmra.mxu0 %v1912
        %v1992 = vpop.f32.mrf.mxu0
        %v1993 = vadd.f32 0.0, %v1992
        %v1994 = vpop.f32.mrf.mxu0
        %v1995 = vpop.f32.mrf.mxu0
        %v1996 = vadd.f32 0.0, %v1995
        %v1997 = vpop.f32.mrf.mxu0
        %1998 = vmatprep.mubr.bf16.mxu0 0
        %1999 = vmatmul.mubr.bf16.gmra.mxu0 %v1915
        %v2000 = vpop.f32.mrf.mxu0
        %v2001 = vadd.f32 0.0, %v2000
        %v2002 = vpop.f32.mrf.mxu0
        %v2003 = vpop.f32.mrf.mxu0
        %v2004 = vadd.f32 0.0, %v2003
        %v2005 = vpop.f32.mrf.mxu0
        %2006 = vmatprep.mubr.bf16.mxu0 0
        %2007 = vmatmul.mubr.bf16.gmra.mxu0 %v1918
        %v2008 = vpop.f32.mrf.mxu0
        %v2009 = vadd.f32 0.0, %v2008
        %v2010 = vpop.f32.mrf.mxu0
        %v2011 = vpop.f32.mrf.mxu0
        %v2012 = vadd.f32 0.0, %v2011
        %v2013 = vpop.f32.mrf.mxu0
        %2014 = vmatprep.mubr.bf16.mxu0 0
        %2015 = vmatmul.mubr.bf16.gmra.mxu0 %v1921
        %v2016 = vpop.f32.mrf.mxu0
        %v2017 = vadd.f32 0.0, %v2016
        %v2018 = vpop.f32.mrf.mxu0
        %v2019 = vpop.f32.mrf.mxu0
        %v2020 = vadd.f32 0.0, %v2019
        %v2021 = vpop.f32.mrf.mxu0
        %2022 = vdwg.mxu0
        %v2023 = vadd.f32 %v1821, %v1961
        %v2024 = vadd.f32 %v1822, %v1964
        %v2025 = vadd.f32 %v1823, %v1969
        %v2026 = vadd.f32 %v1824, %v1972
        %v2027 = vadd.f32 %v1825, %v1977
        %v2028 = vadd.f32 %v1826, %v1980
        %v2029 = vadd.f32 %v1827, %v1985
        %v2030 = vadd.f32 %v1828, %v1988
        %v2031 = vadd.f32 %v1829, %v1993
        %v2032 = vadd.f32 %v1830, %v1996
        %v2033 = vadd.f32 %v1831, %v2001
        %v2034 = vadd.f32 %v1832, %v2004
        %v2035 = vadd.f32 %v1833, %v2009
        %v2036 = vadd.f32 %v1834, %v2012
        %v2037 = vadd.f32 %v1835, %v2017
        %v2038 = vadd.f32 %v1836, %v2020
        %v2039 = vld [vmem:[%s1840] sm:$0xf]
        %v2040 = vld [vmem:[%s1840 + $0x4] sm:$0xf]
        %v2041 = vld [vmem:[%s1840 + $0x8] sm:$0x1]
        %v2042 = vld [vmem:[%s1840 + $0xc] sm:$0xf]
        %v2043 = vld [vmem:[%s1840 + $0x10] sm:$0xf]
        %v2044 = vld [vmem:[%s1840 + $0x14] sm:$0x1]
        %v2045 = vld [vmem:[%s1840 + $0x18] sm:$0xf]
        %v2046 = vld [vmem:[%s1840 + $0x1c] sm:$0xf]
        %v2047 = vld [vmem:[%s1840 + $0x20] sm:$0x1]
        %v2048 = vld [vmem:[%s1840 + $0x24] sm:$0xf]
        %v2049 = vld [vmem:[%s1840 + $0x28] sm:$0xf]
        %v2050 = vld [vmem:[%s1840 + $0x2c] sm:$0x1]
        %v2051 = vld [vmem:[%s1840 + $0x30] sm:$0xf]
        %v2052 = vld [vmem:[%s1840 + $0x34] sm:$0xf]
        %v2053 = vld [vmem:[%s1840 + $0x38] sm:$0x1]
        %v2054 = vld [vmem:[%s1840 + $0x3c] sm:$0xf]
        %v2055 = vld [vmem:[%s1840 + $0x40] sm:$0xf]
        %v2056 = vld [vmem:[%s1840 + $0x44] sm:$0x1]
        %v2057 = vld [vmem:[%s1840 + $0x48] sm:$0xf]
        %v2058 = vld [vmem:[%s1840 + $0x4c] sm:$0xf]
        %v2059 = vld [vmem:[%s1840 + $0x50] sm:$0x1]
        %v2060 = vld [vmem:[%s1840 + $0x54] sm:$0xf]
        %v2061 = vld [vmem:[%s1840 + $0x58] sm:$0xf]
        %v2062 = vld [vmem:[%s1840 + $0x5c] sm:$0x1]
        %v2064 = vshrl.u32 %v2039, 16
        %v2066 = vrot.slane %v2064, 4
        %v2067 = vshll.u32 %v2039, 16
        %v2069 = vrot.slane %v2067, 5
        %v2070 = vor.u32 %v2066, %v2069
        %v2071 = vrot.slane %v2070, 4
        %v2073 = vshll.u32 %v2040, 16
        %v2075 = vrot.slane %v2073, 5
        %v2076 = vsel %vm241, %v2071, %v2075
        %v2077 = vshrl.u32 %v2040, 16
        %v2079 = vrot.slane %v2077, 4
        %v2080 = vor.u32 %v2079, %v2075
        %v2081 = vrot.slane %v2080, 4
        %v2083 = vshll.u32 %v2041, 16
        %v2085 = vrot.slane %v2083, 5
        %v2086 = vsel %vm241, %v2081, %v2085
        %v2088 = vshrl.u32 %v2042, 16
        %v2090 = vrot.slane %v2088, 4
        %v2091 = vshll.u32 %v2042, 16
        %v2093 = vrot.slane %v2091, 5
        %v2094 = vor.u32 %v2090, %v2093
        %v2095 = vrot.slane %v2094, 4
        %v2097 = vshll.u32 %v2043, 16
        %v2099 = vrot.slane %v2097, 5
        %v2100 = vsel %vm241, %v2095, %v2099
        %v2101 = vshrl.u32 %v2043, 16
        %v2103 = vrot.slane %v2101, 4
        %v2104 = vor.u32 %v2103, %v2099
        %v2105 = vrot.slane %v2104, 4
        %v2107 = vshll.u32 %v2044, 16
        %v2109 = vrot.slane %v2107, 5
        %v2110 = vsel %vm241, %v2105, %v2109
        %v2112 = vshrl.u32 %v2045, 16
        %v2114 = vrot.slane %v2112, 4
        %v2115 = vshll.u32 %v2045, 16
        %v2117 = vrot.slane %v2115, 5
        %v2118 = vor.u32 %v2114, %v2117
        %v2119 = vrot.slane %v2118, 4
        %v2121 = vshll.u32 %v2046, 16
        %v2123 = vrot.slane %v2121, 5
        %v2124 = vsel %vm241, %v2119, %v2123
        %v2125 = vshrl.u32 %v2046, 16
        %v2127 = vrot.slane %v2125, 4
        %v2128 = vor.u32 %v2127, %v2123
        %v2129 = vrot.slane %v2128, 4
        %v2131 = vshll.u32 %v2047, 16
        %v2133 = vrot.slane %v2131, 5
        %v2134 = vsel %vm241, %v2129, %v2133
        %v2136 = vshrl.u32 %v2048, 16
        %v2138 = vrot.slane %v2136, 4
        %v2139 = vshll.u32 %v2048, 16
        %v2141 = vrot.slane %v2139, 5
        %v2142 = vor.u32 %v2138, %v2141
        %v2143 = vrot.slane %v2142, 4
        %v2145 = vshll.u32 %v2049, 16
        %v2147 = vrot.slane %v2145, 5
        %v2148 = vsel %vm241, %v2143, %v2147
        %v2149 = vshrl.u32 %v2049, 16
        %v2151 = vrot.slane %v2149, 4
        %v2152 = vor.u32 %v2151, %v2147
        %v2153 = vrot.slane %v2152, 4
        %v2155 = vshll.u32 %v2050, 16
        %v2157 = vrot.slane %v2155, 5
        %v2158 = vsel %vm241, %v2153, %v2157
        %v2160 = vshrl.u32 %v2051, 16
        %v2162 = vrot.slane %v2160, 4
        %v2163 = vshll.u32 %v2051, 16
        %v2165 = vrot.slane %v2163, 5
        %v2166 = vor.u32 %v2162, %v2165
        %v2167 = vrot.slane %v2166, 4
        %v2169 = vshll.u32 %v2052, 16
        %v2171 = vrot.slane %v2169, 5
        %v2172 = vsel %vm241, %v2167, %v2171
        %v2173 = vshrl.u32 %v2052, 16
        %v2175 = vrot.slane %v2173, 4
        %v2176 = vor.u32 %v2175, %v2171
        %v2177 = vrot.slane %v2176, 4
        %v2179 = vshll.u32 %v2053, 16
        %v2181 = vrot.slane %v2179, 5
        %v2182 = vsel %vm241, %v2177, %v2181
        %v2184 = vshrl.u32 %v2054, 16
        %v2186 = vrot.slane %v2184, 4
        %v2187 = vshll.u32 %v2054, 16
        %v2189 = vrot.slane %v2187, 5
        %v2190 = vor.u32 %v2186, %v2189
        %v2191 = vrot.slane %v2190, 4
        %v2193 = vshll.u32 %v2055, 16
        %v2195 = vrot.slane %v2193, 5
        %v2196 = vsel %vm241, %v2191, %v2195
        %v2197 = vshrl.u32 %v2055, 16
        %v2199 = vrot.slane %v2197, 4
        %v2200 = vor.u32 %v2199, %v2195
        %v2201 = vrot.slane %v2200, 4
        %v2203 = vshll.u32 %v2056, 16
        %v2205 = vrot.slane %v2203, 5
        %v2206 = vsel %vm241, %v2201, %v2205
        %v2208 = vshrl.u32 %v2057, 16
        %v2210 = vrot.slane %v2208, 4
        %v2211 = vshll.u32 %v2057, 16
        %v2213 = vrot.slane %v2211, 5
        %v2214 = vor.u32 %v2210, %v2213
        %v2215 = vrot.slane %v2214, 4
        %v2217 = vshll.u32 %v2058, 16
        %v2219 = vrot.slane %v2217, 5
        %v2220 = vsel %vm241, %v2215, %v2219
        %v2221 = vshrl.u32 %v2058, 16
        %v2223 = vrot.slane %v2221, 4
        %v2224 = vor.u32 %v2223, %v2219
        %v2225 = vrot.slane %v2224, 4
        %v2227 = vshll.u32 %v2059, 16
        %v2229 = vrot.slane %v2227, 5
        %v2230 = vsel %vm241, %v2225, %v2229
        %v2232 = vshrl.u32 %v2060, 16
        %v2234 = vrot.slane %v2232, 4
        %v2235 = vshll.u32 %v2060, 16
        %v2237 = vrot.slane %v2235, 5
        %v2238 = vor.u32 %v2234, %v2237
        %v2239 = vrot.slane %v2238, 4
        %v2241 = vshll.u32 %v2061, 16
        %v2243 = vrot.slane %v2241, 5
        %v2244 = vsel %vm241, %v2239, %v2243
        %v2245 = vshrl.u32 %v2061, 16
        %v2247 = vrot.slane %v2245, 4
        %v2248 = vor.u32 %v2247, %v2243
        %v2249 = vrot.slane %v2248, 4
        %v2251 = vshll.u32 %v2062, 16
        %v2253 = vrot.slane %v2251, 5
        %v2254 = vsel %vm241, %v2249, %v2253
        %s2255 = scalar_lea.vmem %s1, 14
        %v2256 = vld [vmem:[%s2255] sm:$0x3]
        %v2257 = vunpack.c.l.b16 %v2076
        %v2258 = vunpack.c.l.b16 %v2086
        %v2259 = vunpack.c.l.b16 %v2100
        %v2260 = vunpack.c.l.b16 %v2110
        %v2261 = vunpack.c.l.b16 %v2124
        %v2262 = vunpack.c.l.b16 %v2134
        %v2263 = vunpack.c.l.b16 %v2148
        %v2264 = vunpack.c.l.b16 %v2158
        %v2265 = vunpack.c.l.b16 %v2172
        %v2266 = vunpack.c.l.b16 %v2182
        %v2267 = vunpack.c.l.b16 %v2196
        %v2268 = vunpack.c.l.b16 %v2206
        %v2269 = vunpack.c.l.b16 %v2220
        %v2270 = vunpack.c.l.b16 %v2230
        %v2271 = vunpack.c.l.b16 %v2244
        %v2272 = vunpack.c.l.b16 %v2254
        %v2273 = vpack.c.b16 %v2258, %v2257
        %v2274 = vpack.c.b16 %v2260, %v2259
        %v2275 = vpack.c.b16 %v2262, %v2261
        %v2276 = vpack.c.b16 %v2264, %v2263
        %v2277 = vpack.c.b16 %v2266, %v2265
        %v2278 = vpack.c.b16 %v2268, %v2267
        %v2279 = vpack.c.b16 %v2270, %v2269
        %v2280 = vpack.c.b16 %v2272, %v2271
        %v2282 = vsel %vm460, %v2273, 0
        %v2285 = vsel %vm460, %v2274, 0
        %v2288 = vsel %vm460, %v2275, 0
        %v2291 = vsel %vm460, %v2276, 0
        %v2294 = vsel %vm460, %v2277, 0
        %v2297 = vsel %vm460, %v2278, 0
        %v2300 = vsel %vm460, %v2279, 0
        %v2303 = vsel %vm460, %v2280, 0
        %v2306 = vsel %vm485, %v2256, 0
        %2308 = vmatprep.subr.bf16.mxu0 0
        %2309 = vmatpush1.bf16.msra.mxu0 0
        %2310 = vmatprep.subr.bf16.mxu0 0
        %2311 = vmatpush1.bf16.msra.mxu0 0
        %2312 = vmatprep.subr.bf16.mxu0 0
        %2313 = vmatpush1.bf16.msra.mxu0 0
        %2314 = vmatprep.subr.bf16.mxu0 0
        %2315 = vmatpush1.bf16.msra.mxu0 0
        %2316 = vmatprep.subr.bf16.mxu0 0
        %2317 = vmatpush1.bf16.msra.mxu0 0
        %2318 = vmatprep.subr.bf16.mxu0 0
        %2319 = vmatpush1.bf16.msra.mxu0 0
        %2320 = vmatprep.subr.bf16.mxu0 0
        %2321 = vmatpush1.bf16.msra.mxu0 0
        %2322 = vmatprep.subr.bf16.mxu0 0
        %2323 = vmatpush1.bf16.msra.mxu0 %v2306
        %2324 = vmatprep.subr.bf16.mxu0 0
        %2325 = vmatpush2.bf16.msra.mxu0 0
        %2326 = vmatprep.subr.bf16.mxu0 0
        %2327 = vmatpush2.bf16.msra.mxu0 0
        %2328 = vmatprep.subr.bf16.mxu0 0
        %2329 = vmatpush2.bf16.msra.mxu0 0
        %2330 = vmatprep.subr.bf16.mxu0 0
        %2331 = vmatpush2.bf16.msra.mxu0 0
        %2332 = vmatprep.subr.bf16.mxu0 0
        %2333 = vmatpush2.bf16.msra.mxu0 0
        %2334 = vmatprep.subr.bf16.mxu0 0
        %2335 = vmatpush2.bf16.msra.mxu0 0
        %2336 = vmatprep.subr.bf16.mxu0 0
        %2337 = vmatpush2.bf16.msra.mxu0 0
        %2338 = vmatprep.subr.bf16.mxu0 0
        %2339 = vmatpush2.bf16.msra.mxu0 0
        %2340 = vmatprep.mubr.bf16.mxu0 0
        %2341 = vmatmul.mubr.bf16.gmra.mxu0 %v2282
        %v2342 = vpop.f32.mrf.mxu0
        %v2343 = vadd.f32 0.0, %v2342
        %v2344 = vpop.f32.mrf.mxu0
        %v2345 = vpop.f32.mrf.mxu0
        %v2346 = vadd.f32 0.0, %v2345
        %v2347 = vpop.f32.mrf.mxu0
        %2348 = vmatprep.mubr.bf16.mxu0 0
        %2349 = vmatmul.mubr.bf16.gmra.mxu0 %v2285
        %v2350 = vpop.f32.mrf.mxu0
        %v2351 = vadd.f32 0.0, %v2350
        %v2352 = vpop.f32.mrf.mxu0
        %v2353 = vpop.f32.mrf.mxu0
        %v2354 = vadd.f32 0.0, %v2353
        %v2355 = vpop.f32.mrf.mxu0
        %2356 = vmatprep.mubr.bf16.mxu0 0
        %2357 = vmatmul.mubr.bf16.gmra.mxu0 %v2288
        %v2358 = vpop.f32.mrf.mxu0
        %v2359 = vadd.f32 0.0, %v2358
        %v2360 = vpop.f32.mrf.mxu0
        %v2361 = vpop.f32.mrf.mxu0
        %v2362 = vadd.f32 0.0, %v2361
        %v2363 = vpop.f32.mrf.mxu0
        %2364 = vmatprep.mubr.bf16.mxu0 0
        %2365 = vmatmul.mubr.bf16.gmra.mxu0 %v2291
        %v2366 = vpop.f32.mrf.mxu0
        %v2367 = vadd.f32 0.0, %v2366
        %v2368 = vpop.f32.mrf.mxu0
        %v2369 = vpop.f32.mrf.mxu0
        %v2370 = vadd.f32 0.0, %v2369
        %v2371 = vpop.f32.mrf.mxu0
        %2372 = vmatprep.mubr.bf16.mxu0 0
        %2373 = vmatmul.mubr.bf16.gmra.mxu0 %v2294
        %v2374 = vpop.f32.mrf.mxu0
        %v2375 = vadd.f32 0.0, %v2374
        %v2376 = vpop.f32.mrf.mxu0
        %v2377 = vpop.f32.mrf.mxu0
        %v2378 = vadd.f32 0.0, %v2377
        %v2379 = vpop.f32.mrf.mxu0
        %2380 = vmatprep.mubr.bf16.mxu0 0
        %2381 = vmatmul.mubr.bf16.gmra.mxu0 %v2297
        %v2382 = vpop.f32.mrf.mxu0
        %v2383 = vadd.f32 0.0, %v2382
        %v2384 = vpop.f32.mrf.mxu0
        %v2385 = vpop.f32.mrf.mxu0
        %v2386 = vadd.f32 0.0, %v2385
        %v2387 = vpop.f32.mrf.mxu0
        %2388 = vmatprep.mubr.bf16.mxu0 0
        %2389 = vmatmul.mubr.bf16.gmra.mxu0 %v2300
        %v2390 = vpop.f32.mrf.mxu0
        %v2391 = vadd.f32 0.0, %v2390
        %v2392 = vpop.f32.mrf.mxu0
        %v2393 = vpop.f32.mrf.mxu0
        %v2394 = vadd.f32 0.0, %v2393
        %v2395 = vpop.f32.mrf.mxu0
        %2396 = vmatprep.mubr.bf16.mxu0 0
        %2397 = vmatmul.mubr.bf16.gmra.mxu0 %v2303
        %v2398 = vpop.f32.mrf.mxu0
        %v2399 = vadd.f32 0.0, %v2398
        %v2400 = vpop.f32.mrf.mxu0
        %v2401 = vpop.f32.mrf.mxu0
        %v2402 = vadd.f32 0.0, %v2401
        %v2403 = vpop.f32.mrf.mxu0
        %2404 = vdwg.mxu0
        %v2405 = vadd.f32 %v2023, %v2343
        %v2406 = vadd.f32 %v2024, %v2346
        %v2407 = vadd.f32 %v2025, %v2351
        %v2408 = vadd.f32 %v2026, %v2354
        %v2409 = vadd.f32 %v2027, %v2359
        %v2410 = vadd.f32 %v2028, %v2362
        %v2411 = vadd.f32 %v2029, %v2367
        %v2412 = vadd.f32 %v2030, %v2370
        %v2413 = vadd.f32 %v2031, %v2375
        %v2414 = vadd.f32 %v2032, %v2378
        %v2415 = vadd.f32 %v2033, %v2383
        %v2416 = vadd.f32 %v2034, %v2386
        %v2417 = vadd.f32 %v2035, %v2391
        %v2418 = vadd.f32 %v2036, %v2394
        %v2419 = vadd.f32 %v2037, %v2399
        %v2420 = vadd.f32 %v2038, %v2402
        %v2421 = vld [vmem:[%s1840] sm:$0xe]
        %v2422 = vld [vmem:[%s1840 + $0xc] sm:$0xe]
        %v2423 = vld [vmem:[%s1840 + $0x18] sm:$0xe]
        %v2424 = vld [vmem:[%s1840 + $0x24] sm:$0xe]
        %v2425 = vld [vmem:[%s1840 + $0x30] sm:$0xe]
        %v2426 = vld [vmem:[%s1840 + $0x3c] sm:$0xe]
        %v2427 = vld [vmem:[%s1840 + $0x48] sm:$0xe]
        %v2428 = vld [vmem:[%s1840 + $0x54] sm:$0xe]
        %v2453 = vrot.slane %v2421, 5
        %v2454 = vrot.slane %v2453, 4
        %v2455 = vrot.slane %v2040, 5
        %v2456 = vsel %vm776, %v2454, %v2455
        %v2457 = vrot.slane %v2455, 4
        %v2458 = vrot.slane %v2041, 5
        %v2459 = vsel %vm776, %v2457, %v2458
        %v2460 = vrot.slane %v2422, 5
        %v2461 = vrot.slane %v2460, 4
        %v2462 = vrot.slane %v2043, 5
        %v2463 = vsel %vm776, %v2461, %v2462
        %v2464 = vrot.slane %v2462, 4
        %v2465 = vrot.slane %v2044, 5
        %v2466 = vsel %vm776, %v2464, %v2465
        %v2467 = vrot.slane %v2423, 5
        %v2468 = vrot.slane %v2467, 4
        %v2469 = vrot.slane %v2046, 5
        %v2470 = vsel %vm776, %v2468, %v2469
        %v2471 = vrot.slane %v2469, 4
        %v2472 = vrot.slane %v2047, 5
        %v2473 = vsel %vm776, %v2471, %v2472
        %v2474 = vrot.slane %v2424, 5
        %v2475 = vrot.slane %v2474, 4
        %v2476 = vrot.slane %v2049, 5
        %v2477 = vsel %vm776, %v2475, %v2476
        %v2478 = vrot.slane %v2476, 4
        %v2479 = vrot.slane %v2050, 5
        %v2480 = vsel %vm776, %v2478, %v2479
        %v2481 = vrot.slane %v2425, 5
        %v2482 = vrot.slane %v2481, 4
        %v2483 = vrot.slane %v2052, 5
        %v2484 = vsel %vm776, %v2482, %v2483
        %v2485 = vrot.slane %v2483, 4
        %v2486 = vrot.slane %v2053, 5
        %v2487 = vsel %vm776, %v2485, %v2486
        %v2488 = vrot.slane %v2426, 5
        %v2489 = vrot.slane %v2488, 4
        %v2490 = vrot.slane %v2055, 5
        %v2491 = vsel %vm776, %v2489, %v2490
        %v2492 = vrot.slane %v2490, 4
        %v2493 = vrot.slane %v2056, 5
        %v2494 = vsel %vm776, %v2492, %v2493
        %v2495 = vrot.slane %v2427, 5
        %v2496 = vrot.slane %v2495, 4
        %v2497 = vrot.slane %v2058, 5
        %v2498 = vsel %vm776, %v2496, %v2497
        %v2499 = vrot.slane %v2497, 4
        %v2500 = vrot.slane %v2059, 5
        %v2501 = vsel %vm776, %v2499, %v2500
        %v2502 = vrot.slane %v2428, 5
        %v2503 = vrot.slane %v2502, 4
        %v2504 = vrot.slane %v2061, 5
        %v2505 = vsel %vm776, %v2503, %v2504
        %v2506 = vrot.slane %v2504, 4
        %v2507 = vrot.slane %v2062, 5
        %v2508 = vsel %vm776, %v2506, %v2507
        %s2509 = scalar_lea.vmem %s1, 16
        %v2510 = vld [vmem:[%s2509] sm:$0x3]
        %v2511 = vunpack.c.l.b16 %v2456
        %v2512 = vunpack.c.l.b16 %v2459
        %v2513 = vunpack.c.l.b16 %v2463
        %v2514 = vunpack.c.l.b16 %v2466
        %v2515 = vunpack.c.l.b16 %v2470
        %v2516 = vunpack.c.l.b16 %v2473
        %v2517 = vunpack.c.l.b16 %v2477
        %v2518 = vunpack.c.l.b16 %v2480
        %v2519 = vunpack.c.l.b16 %v2484
        %v2520 = vunpack.c.l.b16 %v2487
        %v2521 = vunpack.c.l.b16 %v2491
        %v2522 = vunpack.c.l.b16 %v2494
        %v2523 = vunpack.c.l.b16 %v2498
        %v2524 = vunpack.c.l.b16 %v2501
        %v2525 = vunpack.c.l.b16 %v2505
        %v2526 = vunpack.c.l.b16 %v2508
        %v2527 = vpack.c.b16 %v2512, %v2511
        %v2528 = vpack.c.b16 %v2514, %v2513
        %v2529 = vpack.c.b16 %v2516, %v2515
        %v2530 = vpack.c.b16 %v2518, %v2517
        %v2531 = vpack.c.b16 %v2520, %v2519
        %v2532 = vpack.c.b16 %v2522, %v2521
        %v2533 = vpack.c.b16 %v2524, %v2523
        %v2534 = vpack.c.b16 %v2526, %v2525
        %v2536 = vsel %vm460, %v2527, 0
        %v2539 = vsel %vm460, %v2528, 0
        %v2542 = vsel %vm460, %v2529, 0
        %v2545 = vsel %vm460, %v2530, 0
        %v2548 = vsel %vm460, %v2531, 0
        %v2551 = vsel %vm460, %v2532, 0
        %v2554 = vsel %vm460, %v2533, 0
        %v2557 = vsel %vm460, %v2534, 0
        %v2560 = vsel %vm485, %v2510, 0
        %2562 = vmatprep.subr.bf16.mxu0 0
        %2563 = vmatpush1.bf16.msra.mxu0 0
        %2564 = vmatprep.subr.bf16.mxu0 0
        %2565 = vmatpush1.bf16.msra.mxu0 0
        %2566 = vmatprep.subr.bf16.mxu0 0
        %2567 = vmatpush1.bf16.msra.mxu0 0
        %2568 = vmatprep.subr.bf16.mxu0 0
        %2569 = vmatpush1.bf16.msra.mxu0 0
        %2570 = vmatprep.subr.bf16.mxu0 0
        %2571 = vmatpush1.bf16.msra.mxu0 0
        %2572 = vmatprep.subr.bf16.mxu0 0
        %2573 = vmatpush1.bf16.msra.mxu0 0
        %2574 = vmatprep.subr.bf16.mxu0 0
        %2575 = vmatpush1.bf16.msra.mxu0 0
        %2576 = vmatprep.subr.bf16.mxu0 0
        %2577 = vmatpush1.bf16.msra.mxu0 %v2560
        %2578 = vmatprep.subr.bf16.mxu0 0
        %2579 = vmatpush2.bf16.msra.mxu0 0
        %2580 = vmatprep.subr.bf16.mxu0 0
        %2581 = vmatpush2.bf16.msra.mxu0 0
        %2582 = vmatprep.subr.bf16.mxu0 0
        %2583 = vmatpush2.bf16.msra.mxu0 0
        %2584 = vmatprep.subr.bf16.mxu0 0
        %2585 = vmatpush2.bf16.msra.mxu0 0
        %2586 = vmatprep.subr.bf16.mxu0 0
        %2587 = vmatpush2.bf16.msra.mxu0 0
        %2588 = vmatprep.subr.bf16.mxu0 0
        %2589 = vmatpush2.bf16.msra.mxu0 0
        %2590 = vmatprep.subr.bf16.mxu0 0
        %2591 = vmatpush2.bf16.msra.mxu0 0
        %2592 = vmatprep.subr.bf16.mxu0 0
        %2593 = vmatpush2.bf16.msra.mxu0 0
        %2594 = vmatprep.mubr.bf16.mxu0 0
        %2595 = vmatmul.mubr.bf16.gmra.mxu0 %v2536
        %v2596 = vpop.f32.mrf.mxu0
        %v2597 = vadd.f32 0.0, %v2596
        %v2598 = vpop.f32.mrf.mxu0
        %v2599 = vpop.f32.mrf.mxu0
        %v2600 = vadd.f32 0.0, %v2599
        %v2601 = vpop.f32.mrf.mxu0
        %2602 = vmatprep.mubr.bf16.mxu0 0
        %2603 = vmatmul.mubr.bf16.gmra.mxu0 %v2539
        %v2604 = vpop.f32.mrf.mxu0
        %v2605 = vadd.f32 0.0, %v2604
        %v2606 = vpop.f32.mrf.mxu0
        %v2607 = vpop.f32.mrf.mxu0
        %v2608 = vadd.f32 0.0, %v2607
        %v2609 = vpop.f32.mrf.mxu0
        %2610 = vmatprep.mubr.bf16.mxu0 0
        %2611 = vmatmul.mubr.bf16.gmra.mxu0 %v2542
        %v2612 = vpop.f32.mrf.mxu0
        %v2613 = vadd.f32 0.0, %v2612
        %v2614 = vpop.f32.mrf.mxu0
        %v2615 = vpop.f32.mrf.mxu0
        %v2616 = vadd.f32 0.0, %v2615
        %v2617 = vpop.f32.mrf.mxu0
        %2618 = vmatprep.mubr.bf16.mxu0 0
        %2619 = vmatmul.mubr.bf16.gmra.mxu0 %v2545
        %v2620 = vpop.f32.mrf.mxu0
        %v2621 = vadd.f32 0.0, %v2620
        %v2622 = vpop.f32.mrf.mxu0
        %v2623 = vpop.f32.mrf.mxu0
        %v2624 = vadd.f32 0.0, %v2623
        %v2625 = vpop.f32.mrf.mxu0
        %2626 = vmatprep.mubr.bf16.mxu0 0
        %2627 = vmatmul.mubr.bf16.gmra.mxu0 %v2548
        %v2628 = vpop.f32.mrf.mxu0
        %v2629 = vadd.f32 0.0, %v2628
        %v2630 = vpop.f32.mrf.mxu0
        %v2631 = vpop.f32.mrf.mxu0
        %v2632 = vadd.f32 0.0, %v2631
        %v2633 = vpop.f32.mrf.mxu0
        %2634 = vmatprep.mubr.bf16.mxu0 0
        %2635 = vmatmul.mubr.bf16.gmra.mxu0 %v2551
        %v2636 = vpop.f32.mrf.mxu0
        %v2637 = vadd.f32 0.0, %v2636
        %v2638 = vpop.f32.mrf.mxu0
        %v2639 = vpop.f32.mrf.mxu0
        %v2640 = vadd.f32 0.0, %v2639
        %v2641 = vpop.f32.mrf.mxu0
        %2642 = vmatprep.mubr.bf16.mxu0 0
        %2643 = vmatmul.mubr.bf16.gmra.mxu0 %v2554
        %v2644 = vpop.f32.mrf.mxu0
        %v2645 = vadd.f32 0.0, %v2644
        %v2646 = vpop.f32.mrf.mxu0
        %v2647 = vpop.f32.mrf.mxu0
        %v2648 = vadd.f32 0.0, %v2647
        %v2649 = vpop.f32.mrf.mxu0
        %2650 = vmatprep.mubr.bf16.mxu0 0
        %2651 = vmatmul.mubr.bf16.gmra.mxu0 %v2557
        %v2652 = vpop.f32.mrf.mxu0
        %v2653 = vadd.f32 0.0, %v2652
        %v2654 = vpop.f32.mrf.mxu0
        %v2655 = vpop.f32.mrf.mxu0
        %v2656 = vadd.f32 0.0, %v2655
        %v2657 = vpop.f32.mrf.mxu0
        %2658 = vdwg.mxu0
        %v2659 = vadd.f32 %v2405, %v2597
        %v2660 = vadd.f32 %v2406, %v2600
        %v2661 = vadd.f32 %v2407, %v2605
        %v2662 = vadd.f32 %v2408, %v2608
        %v2663 = vadd.f32 %v2409, %v2613
        %v2664 = vadd.f32 %v2410, %v2616
        %v2665 = vadd.f32 %v2411, %v2621
        %v2666 = vadd.f32 %v2412, %v2624
        %v2667 = vadd.f32 %v2413, %v2629
        %v2668 = vadd.f32 %v2414, %v2632
        %v2669 = vadd.f32 %v2415, %v2637
        %v2670 = vadd.f32 %v2416, %v2640
        %v2671 = vadd.f32 %v2417, %v2645
        %v2672 = vadd.f32 %v2418, %v2648
        %v2673 = vadd.f32 %v2419, %v2653
        %v2674 = vadd.f32 %v2420, %v2656
        %v2675 = vsel %vm460, %v2659, 0.0
        %v2676 = vsel %vm460, %v2660, 0.0
        %v2677 = vadd.f32 %v2675, %v2676
        %v2678 = vsel %vm460, %v2661, 0.0
        %v2679 = vadd.f32 %v2677, %v2678
        %v2680 = vsel %vm460, %v2662, 0.0
        %v2681 = vadd.f32 %v2679, %v2680
        %v2682 = vsel %vm460, %v2663, 0.0
        %v2683 = vadd.f32 %v2681, %v2682
        %v2684 = vsel %vm460, %v2664, 0.0
        %v2685 = vadd.f32 %v2683, %v2684
        %v2686 = vsel %vm460, %v2665, 0.0
        %v2687 = vadd.f32 %v2685, %v2686
        %v2688 = vsel %vm460, %v2666, 0.0
        %v2689 = vadd.f32 %v2687, %v2688
        %v2690 = vsel %vm460, %v2667, 0.0
        %v2691 = vadd.f32 %v2689, %v2690
        %v2692 = vsel %vm460, %v2668, 0.0
        %v2693 = vadd.f32 %v2691, %v2692
        %v2694 = vsel %vm460, %v2669, 0.0
        %v2695 = vadd.f32 %v2693, %v2694
        %v2696 = vsel %vm460, %v2670, 0.0
        %v2697 = vadd.f32 %v2695, %v2696
        %v2698 = vsel %vm460, %v2671, 0.0
        %v2699 = vadd.f32 %v2697, %v2698
        %v2700 = vsel %vm460, %v2672, 0.0
        %v2701 = vadd.f32 %v2699, %v2700
        %v2702 = vsel %vm460, %v2673, 0.0
        %v2703 = vadd.f32 %v2701, %v2702
        %v2704 = vsel %vm460, %v2674, 0.0
        %v2705 = vadd.f32 %v2703, %v2704
        %v2706 = vrot.slane %v2705, 4
        %v2707 = vadd.f32 %v2705, %v2706
        %v2708 = vrot.slane %v2707, 2
        %v2709 = vadd.f32 %v2707, %v2708
        %v2710 = vrot.slane %v2709, 1
        %v2711 = vadd.f32 %v2709, %v2710
        %vm2712 = vcmask 24576
        %2713 = vst.msk [vmem:[%s192] sm:$0x1] %vm2712, %v2711
        %v2714 = vmul.f32 %v2659, %v2659
        %v2715 = vmul.f32 %v2660, %v2660
        %v2716 = vmul.f32 %v2661, %v2661
        %v2717 = vmul.f32 %v2662, %v2662
        %v2718 = vmul.f32 %v2663, %v2663
        %v2719 = vmul.f32 %v2664, %v2664
        %v2720 = vmul.f32 %v2665, %v2665
        %v2721 = vmul.f32 %v2666, %v2666
        %v2722 = vmul.f32 %v2667, %v2667
        %v2723 = vmul.f32 %v2668, %v2668
        %v2724 = vmul.f32 %v2669, %v2669
        %v2725 = vmul.f32 %v2670, %v2670
        %v2726 = vmul.f32 %v2671, %v2671
        %v2727 = vmul.f32 %v2672, %v2672
        %v2728 = vmul.f32 %v2673, %v2673
        %v2729 = vmul.f32 %v2674, %v2674
        %v2730 = vsel %vm460, %v2714, 0.0
        %v2731 = vsel %vm460, %v2715, 0.0
        %v2732 = vadd.f32 %v2730, %v2731
        %v2733 = vsel %vm460, %v2716, 0.0
        %v2734 = vadd.f32 %v2732, %v2733
        %v2735 = vsel %vm460, %v2717, 0.0
        %v2736 = vadd.f32 %v2734, %v2735
        %v2737 = vsel %vm460, %v2718, 0.0
        %v2738 = vadd.f32 %v2736, %v2737
        %v2739 = vsel %vm460, %v2719, 0.0
        %v2740 = vadd.f32 %v2738, %v2739
        %v2741 = vsel %vm460, %v2720, 0.0
        %v2742 = vadd.f32 %v2740, %v2741
        %v2743 = vsel %vm460, %v2721, 0.0
        %v2744 = vadd.f32 %v2742, %v2743
        %v2745 = vsel %vm460, %v2722, 0.0
        %v2746 = vadd.f32 %v2744, %v2745
        %v2747 = vsel %vm460, %v2723, 0.0
        %v2748 = vadd.f32 %v2746, %v2747
        %v2749 = vsel %vm460, %v2724, 0.0
        %v2750 = vadd.f32 %v2748, %v2749
        %v2751 = vsel %vm460, %v2725, 0.0
        %v2752 = vadd.f32 %v2750, %v2751
        %v2753 = vsel %vm460, %v2726, 0.0
        %v2754 = vadd.f32 %v2752, %v2753
        %v2755 = vsel %vm460, %v2727, 0.0
        %v2756 = vadd.f32 %v2754, %v2755
        %v2757 = vsel %vm460, %v2728, 0.0
        %v2758 = vadd.f32 %v2756, %v2757
        %v2759 = vsel %vm460, %v2729, 0.0
        %v2760 = vadd.f32 %v2758, %v2759
        %v2761 = vrot.slane %v2760, 4
        %v2762 = vadd.f32 %v2760, %v2761
        %v2763 = vrot.slane %v2762, 2
        %v2764 = vadd.f32 %v2762, %v2763
        %v2765 = vrot.slane %v2764, 1
        %v2766 = vadd.f32 %v2764, %v2765
        %2767 = vst.msk [vmem:[%s192 + $0x1] sm:$0x1] %vm2712, %v2766
        %v2768 = vpack.c.bf16 %v2660, %v2659
        %v2769 = vpack.c.bf16 %v2662, %v2661
        %v2770 = vpack.c.bf16 %v2664, %v2663
        %v2771 = vpack.c.bf16 %v2666, %v2665
        %v2772 = vpack.c.bf16 %v2668, %v2667
        %v2773 = vpack.c.bf16 %v2670, %v2669
        %v2774 = vpack.c.bf16 %v2672, %v2671
        %v2775 = vpack.c.bf16 %v2674, %v2673
        %v2784 = vunpack.c.l.b16 %v2768
        %v2785 = vunpack.c.h.b16 %v2768
        %v2786 = vunpack.c.l.b16 %v2769
        %v2787 = vunpack.c.h.b16 %v2769
        %v2788 = vunpack.c.l.b16 %v2770
        %v2789 = vunpack.c.h.b16 %v2770
        %v2790 = vunpack.c.l.b16 %v2771
        %v2791 = vunpack.c.h.b16 %v2771
        %v2792 = vunpack.c.l.b16 %v2772
        %v2793 = vunpack.c.h.b16 %v2772
        %v2794 = vunpack.c.l.b16 %v2773
        %v2795 = vunpack.c.h.b16 %v2773
        %v2796 = vunpack.c.l.b16 %v2774
        %v2797 = vunpack.c.h.b16 %v2774
        %v2798 = vunpack.c.l.b16 %v2775
        %v2799 = vunpack.c.h.b16 %v2775
        %v2800 = vpack.c.b16 %v2784, %v2784
        %v2801 = vpack.c.b16 %v2785, %v2785
        %v2802 = vpack.c.b16 %v2786, %v2786
        %v2803 = vpack.c.b16 %v2787, %v2787
        %v2804 = vpack.c.b16 %v2788, %v2788
        %v2805 = vpack.c.b16 %v2789, %v2789
        %v2806 = vpack.c.b16 %v2790, %v2790
        %v2807 = vpack.c.b16 %v2791, %v2791
        %v2808 = vpack.c.b16 %v2792, %v2792
        %v2809 = vpack.c.b16 %v2793, %v2793
        %v2810 = vpack.c.b16 %v2794, %v2794
        %v2811 = vpack.c.b16 %v2795, %v2795
        %v2812 = vpack.c.b16 %v2796, %v2796
        %v2813 = vpack.c.b16 %v2797, %v2797
        %v2814 = vpack.c.b16 %v2798, %v2798
        %v2815 = vpack.c.b16 %v2799, %v2799
        %vm2832 = vcmask 27648
        %2833 = vst.msk [vmem:[%s207] sm:$0xf] %vm2832, %v2800
        %2834 = vst.msk [vmem:[%s207 + $0x4] sm:$0xf] %vm2832, %v2801
        %2835 = vst.msk [vmem:[%s207 + $0x8] sm:$0xf] %vm2832, %v2802
        %2836 = vst.msk [vmem:[%s207 + $0xc] sm:$0xf] %vm2832, %v2803
        %2837 = vst.msk [vmem:[%s207 + $0x10] sm:$0xf] %vm2832, %v2804
        %2838 = vst.msk [vmem:[%s207 + $0x14] sm:$0xf] %vm2832, %v2805
        %2839 = vst.msk [vmem:[%s207 + $0x18] sm:$0xf] %vm2832, %v2806
        %2840 = vst.msk [vmem:[%s207 + $0x1c] sm:$0xf] %vm2832, %v2807
        %2841 = vst.msk [vmem:[%s207 + $0x20] sm:$0xf] %vm2832, %v2808
        %2842 = vst.msk [vmem:[%s207 + $0x24] sm:$0xf] %vm2832, %v2809
        %2843 = vst.msk [vmem:[%s207 + $0x28] sm:$0xf] %vm2832, %v2810
        %2844 = vst.msk [vmem:[%s207 + $0x2c] sm:$0xf] %vm2832, %v2811
        %2845 = vst.msk [vmem:[%s207 + $0x30] sm:$0xf] %vm2832, %v2812
        %2846 = vst.msk [vmem:[%s207 + $0x34] sm:$0xf] %vm2832, %v2813
        %2847 = vst.msk [vmem:[%s207 + $0x38] sm:$0xf] %vm2832, %v2814
        %2848 = vst.msk [vmem:[%s207 + $0x3c] sm:$0xf] %vm2832, %v2815
        %s2849 = smul.u32 8, %s23
        %p2850 = scmp.lt.s32.totalorder %s22, 1
        %s2851 = scalar_select %p2850, %s22, 1
        %p2852 = scmp.lt.s32.totalorder %s2849, 15
        %s2853 = scalar_select %p2852, %s2849, 15
        %s2854 = smul.addr %s2853, 2
        %s2855 = smul.addr %s2851, 32
        %s2856 = sadd.s32 %s2854, %s2855
        %s2857 = smul.addr %s2856, 4
        %s2858 = scalar_lea.vmem %s2, %s2857
        %s2859 = sand.u32 %s115, 1
        %s2860 = scalar_lea.sflag [#allocation3], %s2859
        %s2861 = sand.u32 %s115, 1
        %s2862 = smul.addr %s2861, 2
        %s2863 = scalar_lea.vmem [#allocation2], %s2862
        // Predicated region
        $region29: #{tpu_custom_call.1} parent=27 // pred_check
          %p2864 = pneg %p97
        $region30: #{tpu_custom_call.1} parent=27 // pred_check_branch
          %2866 = sbr.rel (%p2864) target = $region32
        $region31: #{tpu_custom_call.1} parent=27 // pred_region
          %s2867 = smul.u32 8, %s23
        $region32: #{tpu_custom_call.1} parent=27 // pred_fallthru
          _
        // Predicated region
        $region33: #{tpu_custom_call.1} parent=27 // pred_check
          %p2868 = pneg %p125
        $region34: #{tpu_custom_call.1} parent=27 // pred_check_branch
          %2870 = sbr.rel (%p2868) target = $region36
        $region35: #{tpu_custom_call.1} parent=27 // pred_region
          %s2872 = ssub.s32 32, 32
          %2873 = vsyncadd %s2860, %s2872
          %s2874 = smul.addr %s22, 2
          %s2875 = sadd.s32 %s23, %s2874
          %s2876 = smul.addr %s2875, 32
          %s2877 = scalar_lea.hbm %s3, %s2876
          %s2879 = sshll.u32 %s2863, 4
          %s2880 = int_to_ptr.vmem [resolvable:$true] %s2879
          %2882 = dma.vmem_to_hbm [thread:$0]  %s2880, 32, %s2877, %s2860
        $region36: #{tpu_custom_call.1} parent=27 // pred_fallthru
          _
      $region28: #{tpu_custom_call.1} parent=5 // pred_fallthru
        _
      %p2883 = scmp.le.s32.totalorder 2, %s13
      // Predicated region
      $region37: #{tpu_custom_call.1} parent=5 // pred_check
        %p2884 = pneg %p2883
      $region38: #{tpu_custom_call.1} parent=5 // pred_check_branch
        %2886 = sbr.rel (%p2884) target = $region40
      $region39: #{tpu_custom_call.1} parent=5 // pred_region
        %s2887 = ssub.s32 %s13, 2
        // Predicated region
        $region41: #{tpu_custom_call.1} parent=39 // pred_check
          %p2888 = pneg %p103
        $region42: #{tpu_custom_call.1} parent=39 // pred_check_branch
          %2890 = sbr.rel (%p2888) target = $region44
        $region43: #{tpu_custom_call.1} parent=39 // pred_region
          %s2891 = smul.u32 8, %s25
          %p2892 = scmp.lt.s32.totalorder %s24, 1
          %s2893 = scalar_select %p2892, %s24, 1
          %p2894 = scmp.lt.s32.totalorder %s2891, 15
          %s2895 = scalar_select %p2894, %s2891, 15
          %s2896 = smul.addr %s2895, 2
          %s2897 = smul.addr %s2893, 32
          %s2898 = sadd.s32 %s2896, %s2897
          %s2899 = smul.addr %s2898, 4
          %s2900 = scalar_lea.vmem %s2, %s2899
        $region44: #{tpu_custom_call.1} parent=39 // pred_fallthru
          _
        // Predicated region
        $region45: #{tpu_custom_call.1} parent=39 // pred_check
          %p2901 = pneg %p131
        $region46: #{tpu_custom_call.1} parent=39 // pred_check_branch
          %2903 = sbr.rel (%p2901) target = $region48
        $region47: #{tpu_custom_call.1} parent=39 // pred_region
          %s2904 = sand.u32 %s116, 1
          %s2905 = scalar_lea.sflag [#allocation3], %s2904
          %s2906 = sand.u32 %s116, 1
          %s2907 = smul.addr %s2906, 2
          %s2908 = scalar_lea.vmem [#allocation2], %s2907
          %2909 = dma.done %s2905, 32
        $region48: #{tpu_custom_call.1} parent=39 // pred_fallthru
          _
      $region40: #{tpu_custom_call.1} parent=5 // pred_fallthru
        _
    $region6: #{tpu_custom_call.1} parent=1 // loop_footer
      %s17 = sadd.s32 1, %s13
    $region7: #{tpu_custom_call.1} parent=1 // loop_footer_branch
      %12 = sbr.rel target = $region3
    $region8: #{tpu_custom_call.1} parent=1 // loop_exit
      _
    %2910 = vsyncpa [#allocation3], 1
    %s2911 = scalar_lea.sflag [#allocation3], 1
    %2912 = vsyncpa %s2911, 1

</llo_original>
